<compile_context>
chip_gen: v6e
topology: v6e:2x2x1
jax: 0.10.0
libtpu: 0.0.40
codegen_flags: <defaults>
</compile_context>

<pallas_src>
import functools
import math

import jax
import jax.numpy as jnp
import numpy as np
from jax.experimental import pallas as pl
from jax.experimental.pallas import tpu as pltpu


def _round_up(x, m):
    return ((x + m - 1) // m) * m


def _device_defaults():
    """Per-generation token tile / VMEM limit / pass-A accumulator shards."""
    try:
        kind = jax.devices()[0].device_kind.lower()
    except Exception:  # pragma: no cover
        kind = ""
    if "v7" in kind:
        # 64 MiB physical VMEM, 2 TensorCores: shard the MXU-bound pass A.
        return {"token_tile": 256, "vmem_limit": 56 * 1024 * 1024, "accum_shards": 2}
    if "v6" in kind or "v5e" in kind or "v5 lite" in kind or "v5litepod" in kind:
        # 128 MiB physical VMEM, 1 TC: bigger tiles for the HBM-bound pass C.
        return {"token_tile": 512, "vmem_limit": 96 * 1024 * 1024, "accum_shards": 1}
    return {"token_tile": 256, "vmem_limit": 48 * 1024 * 1024, "accum_shards": 1}


def _resident(shape, grid_rank):
    """BlockSpec for weights that never change block index: single-buffered."""
    if grid_rank == 2:
        index_map = lambda s, i: (0,) * len(shape)
    else:
        index_map = lambda i: (0,) * len(shape)
    if hasattr(pl, "Buffered"):
        try:
            return pl.BlockSpec(shape, index_map, pipeline_mode=pl.Buffered(1))
        except TypeError:
            pass
    return pl.BlockSpec(shape, index_map)


# ---------------------------------------------------------------------------
# Pass A: centroid assignment + per-centroid sum/count accumulation.
# ---------------------------------------------------------------------------
def _assign_accumulate_kernel(keys_ref, vals_ref, w1_ref, b1_ref, w2_ref, b2_ref,
                              oh_ref, ksum_ref, vsum_ref, cnt_ref, *, n_valid):
    f32 = jnp.float32
    cdt = w1_ref.dtype
    tn = keys_ref.shape[0]
    cp = w2_ref.shape[1]

    keys = keys_ref[...]
    vals = vals_ref[...]

    # center_proj: Linear(H, H//2) -> ReLU -> Linear(H//2, C), lane-padded.
    # Matmuls run in the narrow compute dtype on the MXU, accumulate in f32;
    # biases stay f32 (b2 carries the -1e30 padded-column sentinel).
    h1 = jnp.maximum(
        jnp.dot(keys.astype(cdt), w1_ref[...], preferred_element_type=f32)
        + b1_ref[...], 0.0)
    scores = (jnp.dot(h1.astype(cdt), w2_ref[...], preferred_element_type=f32)
              + b2_ref[...])

    # first-max argmax (matches torch/jnp tie-breaking) -> one-hot
    col = jax.lax.broadcasted_iota(jnp.int32, (tn, cp), 1)
    max_s = jnp.max(scores, axis=-1, keepdims=True)
    idx = jnp.min(jnp.where(scores == max_s, col, cp), axis=-1, keepdims=True)
    oh = (col == idx)                                          # [TN, Cp] bool

    # lane-dense one-hot for pass C (padded token rows are sliced off later)
    oh_ref[...] = oh.astype(oh_ref.dtype)

    # mask padded token rows out of the accumulators
    tile = pl.program_id(0) * pl.num_programs(1) + pl.program_id(1)
    row = tile * tn + jax.lax.broadcasted_iota(jnp.int32, (tn, 1), 0)
    oh_acc = (oh & (row < n_valid)).astype(keys.dtype)         # native-dtype scatter

    @pl.when(pl.program_id(1) == 0)
    def _init():
        ksum_ref[...] = jnp.zeros_like(ksum_ref)
        vsum_ref[...] = jnp.zeros_like(vsum_ref)
        cnt_ref[...] = jnp.zeros_like(cnt_ref)

    # per-centroid scatter-add via one-hot^T matmuls on the MXU (exact sums in
    # the input dtype); counts come out directly as a [Cp, 1] column so pass B
    # never needs a row->column transpose.
    dn = (((0,), (0,)), ((), ()))          # contract over the token axis
    ksum_ref[...] += jax.lax.dot_general(oh_acc, keys, dn, preferred_element_type=f32)
    vsum_ref[...] += jax.lax.dot_general(oh_acc, vals, dn, preferred_element_type=f32)
    ones = jnp.ones((tn, 1), dtype=keys.dtype)
    cnt_ref[...] += jax.lax.dot_general(oh_acc, ones, dn, preferred_element_type=f32)


# ---------------------------------------------------------------------------
# Pass B: reduce shard partials, finalize centroid means, transform MLP.
# ---------------------------------------------------------------------------
def _centroid_transform_kernel(ksum_ref, vsum_ref, cnt_ref,
                               tw1_ref, tb1_ref, tw2_ref, tb2_ref,
                               tkc_ref, tvc_ref):
    f32 = jnp.float32
    cdt = tw1_ref.dtype
    cp = tkc_ref.shape[0]

    ksum = jnp.sum(ksum_ref[...], axis=0)          # reduce shard partials [Cp, H]
    vsum = jnp.sum(vsum_ref[...], axis=0)
    cnt = jnp.sum(cnt_ref[...], axis=0)            # [Cp, 1]

    # clamp BEFORE the divide so empty centroids give 0 means (never gathered)
    recip = 1.0 / jnp.maximum(cnt, 1.0)
    kmean = ksum * recip
    vmean = vsum * recip

    # transform: Linear(H, H) -> ReLU -> Linear(H, H), one pass on [2*Cp, H]
    x = jnp.concatenate([kmean, vmean], axis=0).astype(cdt)
    h = jnp.maximum(
        jnp.dot(x, tw1_ref[...], preferred_element_type=f32) + tb1_ref[...], 0.0)
    t = (jnp.dot(h.astype(cdt), tw2_ref[...], preferred_element_type=f32)
         + tb2_ref[...])
    tkc_ref[...] = t[:cp].astype(tkc_ref.dtype)
    tvc_ref[...] = t[cp:].astype(tvc_ref.dtype)


# ---------------------------------------------------------------------------
# Pass C: one-hot gather of transformed centroids + importance select.
# ---------------------------------------------------------------------------
def _gather_blend_kernel(oh_ref, keys_ref, vals_ref, imp_ref, tkc_ref, tvc_ref,
                         ok_ref, ov_ref, *, sparsity_threshold):
    f32 = jnp.float32
    oh = oh_ref[...]                                           # [TN, Cp] bf16
    tk = jnp.dot(oh, tkc_ref[...], preferred_element_type=f32)  # [TN, H]
    tv = jnp.dot(oh, tvc_ref[...], preferred_element_type=f32)

    keep = imp_ref[...] > sparsity_threshold                   # [TN, 1] bool
    ok_ref[...] = jnp.where(keep, keys_ref[...], tk.astype(ok_ref.dtype))
    ov_ref[...] = jnp.where(keep, vals_ref[...], tv.astype(ov_ref.dtype))


# ---------------------------------------------------------------------------
# Wrapper
# ---------------------------------------------------------------------------
def fastv_compress(keys, values, importance, params, sparsity_threshold=0.1,
                   token_tile=None, compute_dtype=jnp.bfloat16,
                   vmem_limit_bytes=None, accum_shards=None):
    """keys/values: [B, S, H]; importance: [B, S] (or None)."""
    B, S, H = keys.shape
    N = B * S
    dtype = keys.dtype
    f32 = jnp.float32
    cdt = jnp.dtype(compute_dtype)

    defaults = _device_defaults()
    token_tile = token_tile or defaults["token_tile"]
    vmem_limit = vmem_limit_bytes or defaults["vmem_limit"]
    n_shards = accum_shards or defaults["accum_shards"]

    keys_f = keys.reshape(N, H)            # keep native dtype (no f32 upcast)
    vals_f = values.reshape(N, H)
    if importance is None:
        imp_f = jnp.full((N, 1), -1e30, f32)           # mask all-zero (f32!)
    else:
        imp_f = importance.reshape(N, 1).astype(f32)

    # --- token tiling (pad N up; padded rows are masked out / sliced off) ----
    TN = min(token_tile, _round_up(N, 8))
    Np = _round_up(N, n_shards * TN)
    if Np != N:
        pad = Np - N
        keys_f = jnp.pad(keys_f, ((0, pad), (0, 0)))
        vals_f = jnp.pad(vals_f, ((0, pad), (0, 0)))
        imp_f = jnp.pad(imp_f, ((0, pad), (0, 0)))
    tiles_per_shard = Np // (n_shards * TN)
    n_tiles = Np // TN

    # --- lane-pad center_proj params: H//2 -> Hp, C -> Cp; cast weights ------
    w1, b1, w2, b2 = params["w1"], params["b1"], params["w2"], params["b2"]
    Hh, C = w2.shape
    Hp = _round_up(Hh, 128)
    Cp = _round_up(C, 128)
    w1p = jnp.pad(w1, ((0, 0), (0, Hp - Hh))).astype(cdt)
    b1p = jnp.pad(b1, ((0, 0), (0, Hp - Hh))).astype(f32)
    w2p = jnp.pad(w2, ((0, Hp - Hh), (0, Cp - C))).astype(cdt)
    b2p = jnp.pad(b2, ((0, 0), (0, Cp - C)), constant_values=-1e30).astype(f32)
    tw1c = params["tw1"].astype(cdt)
    tb1c = params["tb1"].astype(f32)
    tw2c = params["tw2"].astype(cdt)
    tb2c = params["tb2"].astype(f32)

    ib = dtype.itemsize
    cb = cdt.itemsize
    cost_a = pl.CostEstimate(
        flops=int(2 * Np * (H * Hp + Hp * Cp + 2 * Cp * H + Cp)),
        transcendentals=0,
        bytes_accessed=int(Np * (2 * H * ib + Cp * cb)
                           + (H * Hp + Hp * Cp) * cb + (Hp + Cp) * 4
                           + n_shards * (2 * Cp * H + Cp) * 4))
    cost_c = pl.CostEstimate(
        flops=int(4 * Np * Cp * H),
        transcendentals=0,
        bytes_accessed=int(Np * (Cp * cb + 4 * H * ib + 4) + 2 * Cp * H * cb))

    tok_map2 = lambda s, i: (s * tiles_per_shard + i, 0)
    acc_map2 = lambda s, i: (s, 0, 0)
    tok_map1 = lambda i: (i, 0)

    # ---------------- pass A: assign + accumulate ----------------------------
    oh, ksum, vsum, cnt = pl.pallas_call(
        functools.partial(_assign_accumulate_kernel, n_valid=N),
        grid=(n_shards, tiles_per_shard),
        in_specs=[
            pl.BlockSpec((TN, H), tok_map2),
            pl.BlockSpec((TN, H), tok_map2),
            _resident((H, Hp), 2), _resident((1, Hp), 2),
            _resident((Hp, Cp), 2), _resident((1, Cp), 2),
        ],
        out_specs=[
            pl.BlockSpec((TN, Cp), tok_map2),
            pl.BlockSpec((None, Cp, H), acc_map2),
            pl.BlockSpec((None, Cp, H), acc_map2),
            pl.BlockSpec((None, Cp, 1), acc_map2),
        ],
        out_shape=[
            jax.ShapeDtypeStruct((Np, Cp), cdt),
            jax.ShapeDtypeStruct((n_shards, Cp, H), f32),
            jax.ShapeDtypeStruct((n_shards, Cp, H), f32),
            jax.ShapeDtypeStruct((n_shards, Cp, 1), f32),
        ],
        compiler_params=pltpu.CompilerParams(
            dimension_semantics=("parallel", "arbitrary"),
            vmem_limit_bytes=vmem_limit),
        cost_estimate=cost_a,
    )(keys_f, vals_f, w1p, b1p, w2p, b2p)

    # ---------------- pass B: centroid means + transform (tiny [Cp, H]) ------
    tkc, tvc = pl.pallas_call(
        _centroid_transform_kernel,
        out_shape=[jax.ShapeDtypeStruct((Cp, H), cdt),
                   jax.ShapeDtypeStruct((Cp, H), cdt)],
    )(ksum, vsum, cnt, tw1c, tb1c, tw2c, tb2c)

    # ---------------- pass C: gather + importance select ---------------------
    ok, ov = pl.pallas_call(
        functools.partial(_gather_blend_kernel,
                          sparsity_threshold=sparsity_threshold),
        grid=(n_tiles,),
        in_specs=[
            pl.BlockSpec((TN, Cp), tok_map1),
            pl.BlockSpec((TN, H), tok_map1),
            pl.BlockSpec((TN, H), tok_map1),
            pl.BlockSpec((TN, 1), tok_map1),
            _resident((Cp, H), 1), _resident((Cp, H), 1),
        ],
        out_specs=[pl.BlockSpec((TN, H), tok_map1),
                   pl.BlockSpec((TN, H), tok_map1)],
        out_shape=[jax.ShapeDtypeStruct((Np, H), dtype),
                   jax.ShapeDtypeStruct((Np, H), dtype)],
        compiler_params=pltpu.CompilerParams(
            dimension_semantics=("parallel",),
            vmem_limit_bytes=vmem_limit),
        cost_estimate=cost_c,
    )(oh, keys_f, vals_f, imp_f, tkc, tvc)

    return ok[:N].reshape(B, S, H), ov[:N].reshape(B, S, H)


# ---------------------------------------------------------------------------
# Plain-JAX reference (mirrors the PyTorch forward + the same mixed precision).
# ---------------------------------------------------------------------------
def _reference(keys, values, importance, params, sparsity_threshold=0.1,
               compute_dtype=jnp.bfloat16):
    B, S, H = keys.shape
    N = B * S
    f32 = jnp.float32
    cdt = compute_dtype
    kf = keys.reshape(N, H).astype(f32)
    vf = values.reshape(N, H).astype(f32)

    h1 = jnp.maximum(
        jnp.dot(kf.astype(cdt), params["w1"].astype(cdt),
                preferred_element_type=f32) + params["b1"], 0.0)
    scores = (jnp.dot(h1.astype(cdt), params["w2"].astype(cdt),
                      preferred_element_type=f32) + params["b2"])
    idx = jnp.argmax(scores, axis=-1)                           # [N]
    C = scores.shape[-1]
    onehot = jax.nn.one_hot(idx, C, dtype=f32)                  # [N, C]
    counts = onehot.sum(0)
    ksum = onehot.T @ kf
    vsum = onehot.T @ vf
    safe = jnp.maximum(counts, 1.0)[:, None]
    kcent = ksum / safe
    vcent = vsum / safe

    def transform(x):
        h = jnp.maximum(
            jnp.dot(x.astype(cdt), params["tw1"].astype(cdt),
                    preferred_element_type=f32) + params["tb1"], 0.0)
        return (jnp.dot(h.astype(cdt), params["tw2"].astype(cdt),
                        preferred_element_type=f32) + params["tb2"])

    tkc = transform(kcent).astype(cdt).astype(f32)   # mirror bf16 centroid table
    tvc = transform(vcent).astype(cdt).astype(f32)
    tk = tkc[idx].reshape(B, S, H)
    tv = tvc[idx].reshape(B, S, H)
    if importance is not None:
        mask = importance[..., None] > sparsity_threshold
        tk = jnp.where(mask, keys.astype(f32), tk)
        tv = jnp.where(mask, values.astype(f32), tv)
    return tk, tv


def init_params(key, hidden_size, num_centroids):
    """Deterministic kaiming-normal weights (fan_in), zero biases; stored [in, out]."""
    def kaiming(k, out_dim, in_dim):
        std = math.sqrt(2.0 / in_dim)
        return (jax.random.normal(k, (out_dim, in_dim), jnp.float32) * std).T

    k1, k2, k3, k4 = jax.random.split(key, 4)
    H, C, Hh = hidden_size, num_centroids, hidden_size // 2
    return {
        "w1": kaiming(k1, Hh, H),  "b1": jnp.zeros((1, Hh), jnp.float32),
        "w2": kaiming(k2, C, Hh),  "b2": jnp.zeros((1, C), jnp.float32),
        "tw1": kaiming(k3, H, H),  "tb1": jnp.zeros((1, H), jnp.float32),
        "tw2": kaiming(k4, H, H),  "tb2": jnp.zeros((1, H), jnp.float32),
    }


if __name__ == "__main__":
    B, S, H = 2, 8, 32
    NUM_CENTROIDS = 32
    SPARSITY_THRESHOLD = 0.1

    root = jax.random.PRNGKey(0)
    kp, kk, kv, ki = jax.random.split(root, 4)
    params = init_params(kp, H, NUM_CENTROIDS)

    keys = jax.random.normal(kk, (B, S, H), jnp.float32)
    values = jax.random.normal(kv, (B, S, H), jnp.float32)
    importance = jax.random.uniform(ki, (B, S), jnp.float32)

    # with importance
    ck, cv = fastv_compress(keys, values, importance, params, SPARSITY_THRESHOLD)
    jax.block_until_ready((ck, cv))
    rk, rv = _reference(keys, values, importance, params, SPARSITY_THRESHOLD)
    np.testing.assert_allclose(np.asarray(ck, np.float32), np.asarray(rk, np.float32),
                               rtol=2e-2, atol=2e-2)
    np.testing.assert_allclose(np.asarray(cv, np.float32), np.asarray(rv, np.float32),
                               rtol=2e-2, atol=2e-2)

    # without importance (pure compressed path)
    ck0, cv0 = fastv_compress(keys, values, None, params, SPARSITY_THRESHOLD)
    jax.block_until_ready((ck0, cv0))
    rk0, rv0 = _reference(keys, values, None, params, SPARSITY_THRESHOLD)
    np.testing.assert_allclose(np.asarray(ck0, np.float32), np.asarray(rk0, np.float32),
                               rtol=2e-2, atol=2e-2)
    np.testing.assert_allclose(np.asarray(cv0, np.float32), np.asarray(rv0, np.float32),
                               rtol=2e-2, atol=2e-2)

    print("KERNEL_OK")
</pallas_src>

<mosaic_0001>
module attributes {stable_mosaic.version = 11 : i64} {
  func.func @_assign_accumulate_kernel(%arg0: i32, %arg1: i32, %arg2: memref<16x32xf32, #tpu.memory_space<vmem>>, %arg3: memref<16x32xf32, #tpu.memory_space<vmem>>, %arg4: memref<32x128xbf16, #tpu.memory_space<vmem>>, %arg5: memref<1x128xf32, #tpu.memory_space<vmem>>, %arg6: memref<128x128xbf16, #tpu.memory_space<vmem>>, %arg7: memref<1x128xf32, #tpu.memory_space<vmem>>, %arg8: memref<16x128xbf16, #tpu.memory_space<vmem>>, %arg9: memref<1x128x32xf32, #tpu.memory_space<vmem>>, %arg10: memref<1x128x32xf32, #tpu.memory_space<vmem>>, %arg11: memref<1x128x1xf32, #tpu.memory_space<vmem>>) attributes {dimension_semantics = [#tpu.dimension_semantics<parallel>, #tpu.dimension_semantics<arbitrary>], iteration_bounds = array<i64: 1, 1>, scalar_prefetch = 0 : i64, scratch_operands = 0 : i64, tpu.core_type = #tpu.core_type<tc>, window_params = [{transform_indices = @transform_0, window_bounds = array<i64: 16, 32>}, {transform_indices = @transform_1, window_bounds = array<i64: 16, 32>}, {pipeline_mode = #tpu.pipeline_mode<synchronous>, transform_indices = @transform_2, window_bounds = array<i64: 32, 128>}, {pipeline_mode = #tpu.pipeline_mode<synchronous>, transform_indices = @transform_3, window_bounds = array<i64: 1, 128>}, {pipeline_mode = #tpu.pipeline_mode<synchronous>, transform_indices = @transform_4, window_bounds = array<i64: 128, 128>}, {pipeline_mode = #tpu.pipeline_mode<synchronous>, transform_indices = @transform_5, window_bounds = array<i64: 1, 128>}, {transform_indices = @transform_6, window_bounds = array<i64: 16, 128>}, {transform_indices = @transform_7, window_bounds = array<i64: 1, 128, 32>}, {transform_indices = @transform_8, window_bounds = array<i64: 1, 128, 32>}, {transform_indices = @transform_9, window_bounds = array<i64: 1, 128, 1>}]} {
    %c0 = arith.constant 0 : index
    %c0_0 = arith.constant 0 : index
    %0 = vector.load %arg2[%c0, %c0_0] : memref<16x32xf32, #tpu.memory_space<vmem>>, vector<16x32xf32>
    %c0_1 = arith.constant 0 : index
    %c0_2 = arith.constant 0 : index
    %1 = vector.load %arg3[%c0_1, %c0_2] : memref<16x32xf32, #tpu.memory_space<vmem>>, vector<16x32xf32>
    %2 = arith.truncf %0 : vector<16x32xf32> to vector<16x32xbf16>
    %c0_3 = arith.constant 0 : index
    %c0_4 = arith.constant 0 : index
    %3 = vector.load %arg4[%c0_3, %c0_4] : memref<32x128xbf16, #tpu.memory_space<vmem>>, vector<32x128xbf16>
    %cst = arith.constant dense<0.000000e+00> : vector<16x128xf32>
    %4 = tpu.matmul %2, %3, %cst {dimension_numbers = #tpu.dot_dimension_numbers<[1], [0], [0], [1], [0, 0, 1, 1], [], []>} : vector<16x32xbf16>, vector<32x128xbf16>, vector<16x128xf32> -> vector<16x128xf32>
    %c0_5 = arith.constant 0 : index
    %c0_6 = arith.constant 0 : index
    %5 = vector.load %arg5[%c0_5, %c0_6] : memref<1x128xf32, #tpu.memory_space<vmem>>, vector<1x128xf32>
    %6 = vector.broadcast %5 : vector<1x128xf32> to vector<16x128xf32>
    %7 = arith.addf %4, %6 : vector<16x128xf32>
    %cst_7 = arith.constant 0.000000e+00 : f32
    %8 = vector.broadcast %cst_7 : f32 to vector<16x128xf32>
    %9 = arith.maximumf %7, %8 : vector<16x128xf32>
    %10 = arith.truncf %9 : vector<16x128xf32> to vector<16x128xbf16>
    %c0_8 = arith.constant 0 : index
    %c0_9 = arith.constant 0 : index
    %11 = vector.load %arg6[%c0_8, %c0_9] : memref<128x128xbf16, #tpu.memory_space<vmem>>, vector<128x128xbf16>
    %cst_10 = arith.constant dense<0.000000e+00> : vector<16x128xf32>
    %12 = tpu.matmul %10, %11, %cst_10 {dimension_numbers = #tpu.dot_dimension_numbers<[1], [0], [0], [1], [0, 0, 1, 1], [], []>} : vector<16x128xbf16>, vector<128x128xbf16>, vector<16x128xf32> -> vector<16x128xf32>
    %c0_11 = arith.constant 0 : index
    %c0_12 = arith.constant 0 : index
    %13 = vector.load %arg7[%c0_11, %c0_12] : memref<1x128xf32, #tpu.memory_space<vmem>>, vector<1x128xf32>
    %14 = vector.broadcast %13 : vector<1x128xf32> to vector<16x128xf32>
    %15 = arith.addf %12, %14 : vector<16x128xf32>
    %16 = tpu.iota {dimensions = array<i32: 1>} : vector<16x128xi32>
    %cst_13 = arith.constant dense<0xFF800000> : vector<16xf32>
    %17 = vector.multi_reduction <maximumf>, %15, %cst_13 [1] : vector<16x128xf32> to vector<16xf32>
    %18 = vector.shape_cast %17 : vector<16xf32> to vector<16x1xf32>
    %19 = vector.broadcast %18 : vector<16x1xf32> to vector<16x128xf32>
    %20 = arith.cmpf oeq, %15, %19 : vector<16x128xf32>
    %c128_i32 = arith.constant 128 : i32
    %21 = vector.broadcast %c128_i32 : i32 to vector<16x128xi32>
    %22 = arith.select %20, %16, %21 : vector<16x128xi1>, vector<16x128xi32>
    %cst_14 = arith.constant dense<2147483647> : vector<16xi32>
    %23 = vector.multi_reduction <minsi>, %22, %cst_14 [1] : vector<16x128xi32> to vector<16xi32>
    %24 = vector.shape_cast %23 : vector<16xi32> to vector<16x1xi32>
    %25 = vector.broadcast %24 : vector<16x1xi32> to vector<16x128xi32>
    %26 = arith.cmpi eq, %16, %25 : vector<16x128xi32>
    %27 = arith.extui %26 : vector<16x128xi1> to vector<16x128xi32>
    %28 = arith.sitofp %27 : vector<16x128xi32> to vector<16x128xf32>
    %29 = arith.truncf %28 : vector<16x128xf32> to vector<16x128xbf16>
    %c0_15 = arith.constant 0 : index
    %c0_16 = arith.constant 0 : index
    %30 = vector.load %arg8[%c0_15, %c0_16] : memref<16x128xbf16, #tpu.memory_space<vmem>>, vector<16x128xbf16>
    tpu.vector_store %arg8[%c0_15, %c0_16], %29 {strides = array<i32>} : memref<16x128xbf16, #tpu.memory_space<vmem>>, vector<16x128xbf16>,
    %c1_i32 = arith.constant 1 : i32
    %31 = arith.muli %arg0, %c1_i32 : i32
    %32 = arith.addi %31, %arg1 : i32
    %c16_i32 = arith.constant 16 : i32
    %33 = arith.muli %32, %c16_i32 : i32
    %34 = tpu.iota {dimensions = array<i32: 0>} : vector<16x1xi32>
    %35 = vector.broadcast %33 : i32 to vector<16x1xi32>
    %36 = arith.addi %35, %34 : vector<16x1xi32>
    %c16_i32_17 = arith.constant 16 : i32
    %37 = vector.broadcast %c16_i32_17 : i32 to vector<16x1xi32>
    %38 = arith.cmpi slt, %36, %37 : vector<16x1xi32>
    %39 = vector.broadcast %38 : vector<16x1xi1> to vector<16x128xi1>
    %40 = arith.andi %26, %39 : vector<16x128xi1>
    %41 = arith.extui %40 : vector<16x128xi1> to vector<16x128xi32>
    %42 = arith.sitofp %41 : vector<16x128xi32> to vector<16x128xf32>
    %c0_i32 = arith.constant 0 : i32
    %43 = arith.cmpi eq, %arg1, %c0_i32 : i32
    %44 = arith.extui %43 : i1 to i32
    %c0_i32_18 = arith.constant 0 : i32
    %45 = arith.cmpi ne, %44, %c0_i32_18 : i32
    scf.if %45 {
      %cst_41 = arith.constant 0.000000e+00 : f32
      %68 = vector.broadcast %cst_41 : f32 to vector<128x32xf32>
      %c0_42 = arith.constant 0 : index
      %c0_43 = arith.constant 0 : index
      %c0_44 = arith.constant 0 : index
      %69 = vector.load %arg9[%c0_42, %c0_43, %c0_44] : memref<1x128x32xf32, #tpu.memory_space<vmem>>, vector<1x128x32xf32>
      %70 = vector.shape_cast %69 : vector<1x128x32xf32> to vector<128x32xf32>
      %71 = vector.shape_cast %68 : vector<128x32xf32> to vector<1x128x32xf32>
      tpu.vector_store %arg9[%c0_42, %c0_43, %c0_44], %71 {strides = array<i32>} : memref<1x128x32xf32, #tpu.memory_space<vmem>>, vector<1x128x32xf32>,
      %cst_45 = arith.constant 0.000000e+00 : f32
      %72 = vector.broadcast %cst_45 : f32 to vector<128x32xf32>
      %c0_46 = arith.constant 0 : index
      %c0_47 = arith.constant 0 : index
      %c0_48 = arith.constant 0 : index
      %73 = vector.load %arg10[%c0_46, %c0_47, %c0_48] : memref<1x128x32xf32, #tpu.memory_space<vmem>>, vector<1x128x32xf32>
      %74 = vector.shape_cast %73 : vector<1x128x32xf32> to vector<128x32xf32>
      %75 = vector.shape_cast %72 : vector<128x32xf32> to vector<1x128x32xf32>
      tpu.vector_store %arg10[%c0_46, %c0_47, %c0_48], %75 {strides = array<i32>} : memref<1x128x32xf32, #tpu.memory_space<vmem>>, vector<1x128x32xf32>,
      %cst_49 = arith.constant 0.000000e+00 : f32
      %76 = vector.broadcast %cst_49 : f32 to vector<128x1xf32>
      %c0_50 = arith.constant 0 : index
      %c0_51 = arith.constant 0 : index
      %c0_52 = arith.constant 0 : index
      %77 = vector.load %arg11[%c0_50, %c0_51, %c0_52] : memref<1x128x1xf32, #tpu.memory_space<vmem>>, vector<1x128x1xf32>
      %78 = vector.shape_cast %77 : vector<1x128x1xf32> to vector<128x1xf32>
      %79 = vector.shape_cast %76 : vector<128x1xf32> to vector<1x128x1xf32>
      tpu.vector_store %arg11[%c0_50, %c0_51, %c0_52], %79 {strides = array<i32>} : memref<1x128x1xf32, #tpu.memory_space<vmem>>, vector<1x128x1xf32>,
    } else {
    }
    %c0_19 = arith.constant 0 : index
    %c0_20 = arith.constant 0 : index
    %c0_21 = arith.constant 0 : index
    %46 = vector.load %arg9[%c0_19, %c0_20, %c0_21] : memref<1x128x32xf32, #tpu.memory_space<vmem>>, vector<1x128x32xf32>
    %47 = vector.shape_cast %46 : vector<1x128x32xf32> to vector<128x32xf32>
    %cst_22 = arith.constant dense<0.000000e+00> : vector<128x32xf32>
    %48 = tpu.matmul %42, %0, %cst_22 {dimension_numbers = #tpu.dot_dimension_numbers<[0], [0], [1], [1], [0, 1, 1, 1], [], []>} : vector<16x128xf32>, vector<16x32xf32>, vector<128x32xf32> -> vector<128x32xf32>
    %49 = arith.addf %47, %48 : vector<128x32xf32>
    %c0_23 = arith.constant 0 : index
    %c0_24 = arith.constant 0 : index
    %c0_25 = arith.constant 0 : index
    %50 = vector.load %arg9[%c0_23, %c0_24, %c0_25] : memref<1x128x32xf32, #tpu.memory_space<vmem>>, vector<1x128x32xf32>
    %51 = vector.shape_cast %50 : vector<1x128x32xf32> to vector<128x32xf32>
    %52 = vector.shape_cast %49 : vector<128x32xf32> to vector<1x128x32xf32>
    tpu.vector_store %arg9[%c0_23, %c0_24, %c0_25], %52 {strides = array<i32>} : memref<1x128x32xf32, #tpu.memory_space<vmem>>, vector<1x128x32xf32>,
    %c0_26 = arith.constant 0 : index
    %c0_27 = arith.constant 0 : index
    %c0_28 = arith.constant 0 : index
    %53 = vector.load %arg10[%c0_26, %c0_27, %c0_28] : memref<1x128x32xf32, #tpu.memory_space<vmem>>, vector<1x128x32xf32>
    %54 = vector.shape_cast %53 : vector<1x128x32xf32> to vector<128x32xf32>
    %cst_29 = arith.constant dense<0.000000e+00> : vector<128x32xf32>
    %55 = tpu.matmul %42, %1, %cst_29 {dimension_numbers = #tpu.dot_dimension_numbers<[0], [0], [1], [1], [0, 1, 1, 1], [], []>} : vector<16x128xf32>, vector<16x32xf32>, vector<128x32xf32> -> vector<128x32xf32>
    %56 = arith.addf %54, %55 : vector<128x32xf32>
    %c0_30 = arith.constant 0 : index
    %c0_31 = arith.constant 0 : index
    %c0_32 = arith.constant 0 : index
    %57 = vector.load %arg10[%c0_30, %c0_31, %c0_32] : memref<1x128x32xf32, #tpu.memory_space<vmem>>, vector<1x128x32xf32>
    %58 = vector.shape_cast %57 : vector<1x128x32xf32> to vector<128x32xf32>
    %59 = vector.shape_cast %56 : vector<128x32xf32> to vector<1x128x32xf32>
    tpu.vector_store %arg10[%c0_30, %c0_31, %c0_32], %59 {strides = array<i32>} : memref<1x128x32xf32, #tpu.memory_space<vmem>>, vector<1x128x32xf32>,
    %cst_33 = arith.constant 1.000000e+00 : f32
    %60 = vector.broadcast %cst_33 : f32 to vector<16x1xf32>
    %c0_34 = arith.constant 0 : index
    %c0_35 = arith.constant 0 : index
    %c0_36 = arith.constant 0 : index
    %61 = vector.load %arg11[%c0_34, %c0_35, %c0_36] : memref<1x128x1xf32, #tpu.memory_space<vmem>>, vector<1x128x1xf32>
    %62 = vector.shape_cast %61 : vector<1x128x1xf32> to vector<128x1xf32>
    %cst_37 = arith.constant dense<0.000000e+00> : vector<128x1xf32>
    %63 = tpu.matmul %42, %60, %cst_37 {dimension_numbers = #tpu.dot_dimension_numbers<[0], [0], [1], [1], [0, 1, 1, 1], [], []>} : vector<16x128xf32>, vector<16x1xf32>, vector<128x1xf32> -> vector<128x1xf32>
    %64 = arith.addf %62, %63 : vector<128x1xf32>
    %c0_38 = arith.constant 0 : index
    %c0_39 = arith.constant 0 : index
    %c0_40 = arith.constant 0 : index
    %65 = vector.load %arg11[%c0_38, %c0_39, %c0_40] : memref<1x128x1xf32, #tpu.memory_space<vmem>>, vector<1x128x1xf32>
    %66 = vector.shape_cast %65 : vector<1x128x1xf32> to vector<128x1xf32>
    %67 = vector.shape_cast %64 : vector<128x1xf32> to vector<1x128x1xf32>
    tpu.vector_store %arg11[%c0_38, %c0_39, %c0_40], %67 {strides = array<i32>} : memref<1x128x1xf32, #tpu.memory_space<vmem>>, vector<1x128x1xf32>,
    return
  }
  func.func @transform_0(%arg0: i32, %arg1: i32) -> (i32, i32) {
    %c1_i32 = arith.constant 1 : i32
    %0 = arith.muli %arg0, %c1_i32 : i32
    %1 = arith.addi %0, %arg1 : i32
    %c0_i32 = arith.constant 0 : i32
    %c0_i32_0 = arith.constant 0 : i32
    return %1, %c0_i32 : i32, i32
  }
  func.func @transform_1(%arg0: i32, %arg1: i32) -> (i32, i32) {
    %c1_i32 = arith.constant 1 : i32
    %0 = arith.muli %arg0, %c1_i32 : i32
    %1 = arith.addi %0, %arg1 : i32
    %c0_i32 = arith.constant 0 : i32
    %c0_i32_0 = arith.constant 0 : i32
    return %1, %c0_i32 : i32, i32
  }
  func.func @transform_2(%arg0: i32, %arg1: i32) -> (i32, i32) {
    %c0_i32 = arith.constant 0 : i32
    %c0_i32_0 = arith.constant 0 : i32
    %c0_i32_1 = arith.constant 0 : i32
    return %c0_i32, %c0_i32_0 : i32, i32
  }
  func.func @transform_3(%arg0: i32, %arg1: i32) -> (i32, i32) {
    %c0_i32 = arith.constant 0 : i32
    %c0_i32_0 = arith.constant 0 : i32
    %c0_i32_1 = arith.constant 0 : i32
    return %c0_i32, %c0_i32_0 : i32, i32
  }
  func.func @transform_4(%arg0: i32, %arg1: i32) -> (i32, i32) {
    %c0_i32 = arith.constant 0 : i32
    %c0_i32_0 = arith.constant 0 : i32
    %c0_i32_1 = arith.constant 0 : i32
    return %c0_i32, %c0_i32_0 : i32, i32
  }
  func.func @transform_5(%arg0: i32, %arg1: i32) -> (i32, i32) {
    %c0_i32 = arith.constant 0 : i32
    %c0_i32_0 = arith.constant 0 : i32
    %c0_i32_1 = arith.constant 0 : i32
    return %c0_i32, %c0_i32_0 : i32, i32
  }
  func.func @transform_6(%arg0: i32, %arg1: i32) -> (i32, i32) {
    %c1_i32 = arith.constant 1 : i32
    %0 = arith.muli %arg0, %c1_i32 : i32
    %1 = arith.addi %0, %arg1 : i32
    %c0_i32 = arith.constant 0 : i32
    %c0_i32_0 = arith.constant 0 : i32
    return %1, %c0_i32 : i32, i32
  }
  func.func @transform_7(%arg0: i32, %arg1: i32) -> (i32, i32, i32) {
    %c0_i32 = arith.constant 0 : i32
    %c0_i32_0 = arith.constant 0 : i32
    %c0_i32_1 = arith.constant 0 : i32
    return %arg0, %c0_i32, %c0_i32_0 : i32, i32, i32
  }
  func.func @transform_8(%arg0: i32, %arg1: i32) -> (i32, i32, i32) {
    %c0_i32 = arith.constant 0 : i32
    %c0_i32_0 = arith.constant 0 : i32
    %c0_i32_1 = arith.constant 0 : i32
    return %arg0, %c0_i32, %c0_i32_0 : i32, i32, i32
  }
  func.func @transform_9(%arg0: i32, %arg1: i32) -> (i32, i32, i32) {
    %c0_i32 = arith.constant 0 : i32
    %c0_i32_0 = arith.constant 0 : i32
    %c0_i32_1 = arith.constant 0 : i32
    return %arg0, %c0_i32, %c0_i32_0 : i32, i32, i32
  }
}

</mosaic_0001>

<llo_original>
// kernel: tpu_custom_call.1
$region0: #{tpu_custom_call.1}
  #allocation0 [shape = 'u32[]', space=smem, size = 0x4, offset = 0x4, fixed_abs, tag = 'smem constant byte address 0x4 - core index']
  #allocation1 [shape = 'u32[144,128]{1,0:T(1,128)}', space=vmem, size = 0x12000, scoped, tag = 'internal scratch']
  %s0 = inlined_call_operand.hbm [shape: f32[16,32], index: 0, kind: input, shape index: {}]
  %s1 = inlined_call_operand.hbm [shape: f32[16,32], index: 1, kind: input, shape index: {}]
  %s2 = inlined_call_operand.hbm [shape: bf16[32,128], index: 2, kind: input, shape index: {}]
  %s3 = inlined_call_operand.vmem [shape: f32[1,128], index: 3, kind: input, shape index: {}]
  %s4 = inlined_call_operand.hbm [shape: bf16[128,128], index: 4, kind: input, shape index: {}]
  %s5 = inlined_call_operand.vmem [shape: f32[1,128], index: 5, kind: input, shape index: {}]
  %s6 = inlined_call_operand.hbm [shape: bf16[16,128], index: 6, kind: output, shape index: {0}]
  %s7 = inlined_call_operand.vmem [shape: f32[1,128,32], index: 7, kind: output, shape index: {1}]
  %s8 = inlined_call_operand.vmem [shape: f32[1,128,32], index: 8, kind: output, shape index: {2}]
  %s9 = inlined_call_operand.vmem [shape: f32[1,128,1], index: 9, kind: output, shape index: {3}]
  %10 = xla_tuple %s6, %s7, %s8, %s9
  %s11 = sld [smem:[#allocation0]]
  $region78: #{tpu_custom_call.1} parent=0
    _
  %s13 = ssub.s32 1, %s11
  %s14 = scalar_select 0, %s13, %s11
  $region1: #{tpu_custom_call.1} parent=0
    #allocation2 [shape = 'u8[8192]{0}', space=vmem, size = 0x2000, scoped, tag = 'input window, operand 0, single buffered']
    #allocation3 [shape = 's32[1]{0}', space=sflag, size = 0x4, scoped, tag = 'scoped memory for tpu_custom_call.1']
    #allocation4 [shape = 's32[1]{0}', space=sflag, size = 0x4, scoped, tag = 'scoped memory for tpu_custom_call.1']
    #allocation5 [shape = 'u8[8192]{0}', space=vmem, size = 0x2000, scoped, tag = 'input window, operand 1, single buffered']
    #allocation6 [shape = 's32[1]{0}', space=sflag, size = 0x4, scoped, tag = 'scoped memory for tpu_custom_call.1']
    #allocation7 [shape = 'u8[8192]{0}', space=vmem, size = 0x2000, scoped, tag = 'input window, operand 2, single buffered']
    #allocation8 [shape = 'u8[32768]{0}', space=vmem, size = 0x8000, scoped, tag = 'input window, operand 4, single buffered']
    #allocation9 [shape = 's32[1]{0}', space=sflag, size = 0x4, scoped, tag = 'scoped memory for tpu_custom_call.1']
    #allocation10 [shape = 'u8[4096]{0}', space=vmem, size = 0x1000, scoped, tag = 'output window, operand 0, single buffered']
    %15 = vsyncpa [#allocation3], 0
    %16 = vsyncpa [#allocation6], 0
    %17 = vsyncpa [#allocation9], 0
    %18 = vsyncpa [#allocation4], 0
    // Predicated region
    $region2: #{tpu_custom_call.1} parent=1 // pred_check
      _
    $region3: #{tpu_custom_call.1} parent=1 // pred_check_branch
      %20 = sbr.rel (0) target = $region5
    $region4: #{tpu_custom_call.1} parent=1 // pred_region
      %s21 = sadd.s32 0, 0
      %s22 = smul.u32 2, %s21
      %s24 = ssub.s32 256, 256
      %25 = vsyncadd [#allocation3], %s24
      %s26 = smul.addr %s22, 128
      %s27 = scalar_lea.hbm %s0, %s26
      %s28 = sshll.u32 [#allocation2], 4
      %s29 = int_to_ptr.vmem [resolvable:$true] %s28
      %34 = dma.hbm_to_vmem [thread:$0]  %s27, 256, %s29, [#allocation3], 128, 128, 8
    $region5: #{tpu_custom_call.1} parent=1 // pred_fallthru
      _
    // Predicated region
    $region6: #{tpu_custom_call.1} parent=1 // pred_check
      _
    $region7: #{tpu_custom_call.1} parent=1 // pred_check_branch
      %36 = sbr.rel (0) target = $region9
    $region8: #{tpu_custom_call.1} parent=1 // pred_region
      %s37 = sadd.s32 0, 0
      %s38 = smul.u32 2, %s37
      %s40 = ssub.s32 256, 256
      %41 = vsyncadd [#allocation6], %s40
      %s42 = smul.addr %s38, 128
      %s43 = scalar_lea.hbm %s1, %s42
      %s44 = sshll.u32 [#allocation5], 4
      %s45 = int_to_ptr.vmem [resolvable:$true] %s44
      %50 = dma.hbm_to_vmem [thread:$0]  %s43, 256, %s45, [#allocation6], 128, 128, 8
    $region9: #{tpu_custom_call.1} parent=1 // pred_fallthru
      _
    // Predicated region
    $region10: #{tpu_custom_call.1} parent=1 // pred_check
      _
    $region11: #{tpu_custom_call.1} parent=1 // pred_check_branch
      %52 = sbr.rel (0) target = $region13
    $region12: #{tpu_custom_call.1} parent=1 // pred_region
      %s54 = ssub.s32 256, 256
      %55 = vsyncadd [#allocation6], %s54
      %s56 = sshll.u32 [#allocation7], 4
      %s57 = int_to_ptr.vmem [resolvable:$true] %s56
      %62 = dma.hbm_to_vmem [thread:$0]  %s2, 256, %s57, [#allocation6], 64, 64, 4
    $region13: #{tpu_custom_call.1} parent=1 // pred_fallthru
      _
    // Predicated region
    $region14: #{tpu_custom_call.1} parent=1 // pred_check
      _
    $region15: #{tpu_custom_call.1} parent=1 // pred_check_branch
      %64 = sbr.rel (0) target = $region17
    $region16: #{tpu_custom_call.1} parent=1 // pred_region
      _
    $region17: #{tpu_custom_call.1} parent=1 // pred_fallthru
      _
    // Predicated region
    $region18: #{tpu_custom_call.1} parent=1 // pred_check
      _
    $region19: #{tpu_custom_call.1} parent=1 // pred_check_branch
      %66 = sbr.rel (0) target = $region21
    $region20: #{tpu_custom_call.1} parent=1 // pred_region
      %s68 = ssub.s32 1024, 1024
      %69 = vsyncadd [#allocation9], %s68
      %s70 = sshll.u32 [#allocation8], 4
      %s71 = int_to_ptr.vmem [resolvable:$true] %s70
      %76 = dma.hbm_to_vmem [thread:$0]  %s4, 1024, %s71, [#allocation9], 64, 64, 4
    $region21: #{tpu_custom_call.1} parent=1 // pred_fallthru
      _
    // Predicated region
    $region22: #{tpu_custom_call.1} parent=1 // pred_check
      _
    $region23: #{tpu_custom_call.1} parent=1 // pred_check_branch
      %78 = sbr.rel (0) target = $region25
    $region24: #{tpu_custom_call.1} parent=1 // pred_region
      _
    $region25: #{tpu_custom_call.1} parent=1 // pred_fallthru
      _
    // Predicated region
    $region26: #{tpu_custom_call.1} parent=1 // pred_check
      _
    $region27: #{tpu_custom_call.1} parent=1 // pred_check_branch
      %80 = sbr.rel (0) target = $region29
    $region28: #{tpu_custom_call.1} parent=1 // pred_region
      %81 = dma.done [#allocation3], 256
    $region29: #{tpu_custom_call.1} parent=1 // pred_fallthru
      _
    // Predicated region
    $region30: #{tpu_custom_call.1} parent=1 // pred_check
      _
    $region31: #{tpu_custom_call.1} parent=1 // pred_check_branch
      %83 = sbr.rel (0) target = $region33
    $region32: #{tpu_custom_call.1} parent=1 // pred_region
      %84 = dma.done [#allocation6], 256
    $region33: #{tpu_custom_call.1} parent=1 // pred_fallthru
      _
    // Predicated region
    $region34: #{tpu_custom_call.1} parent=1 // pred_check
      _
    $region35: #{tpu_custom_call.1} parent=1 // pred_check_branch
      %86 = sbr.rel (0) target = $region37
    $region36: #{tpu_custom_call.1} parent=1 // pred_region
      %87 = dma.done [#allocation6], 256
    $region37: #{tpu_custom_call.1} parent=1 // pred_fallthru
      _
    // Predicated region
    $region38: #{tpu_custom_call.1} parent=1 // pred_check
      _
    $region39: #{tpu_custom_call.1} parent=1 // pred_check_branch
      %89 = sbr.rel (0) target = $region41
    $region40: #{tpu_custom_call.1} parent=1 // pred_region
      %90 = dma.done [#allocation9], 1024
    $region41: #{tpu_custom_call.1} parent=1 // pred_fallthru
      _
    %s91 = sadd.s32 0, 0
    %s92 = smul.u32 2, %s91
    %s93 = sadd.s32 0, 0
    %s94 = smul.u32 2, %s93
    %s95 = sadd.s32 0, 0
    %s96 = smul.u32 2, %s95
    %v98 = vld [vmem:[#allocation2] sm:$0xff]
    %v99 = vld [vmem:[#allocation2 + $0x8] sm:$0xff]
    %v100 = vld [vmem:[#allocation5] sm:$0xff]
    %v101 = vld [vmem:[#allocation5 + $0x8] sm:$0xff]
    %v102 = vpack.c.bf16 %v99, %v98
    %v103 = vld [vmem:[#allocation7] sm:$0xf]
    %v104 = vld [vmem:[#allocation7 + $0x4] sm:$0xf]
    %v105 = vld [vmem:[#allocation7 + $0x8] sm:$0xf]
    %v106 = vld [vmem:[#allocation7 + $0xc] sm:$0xf]
    %v107 = vld [vmem:[%s3] sm:$0x1]
    %v109 = vlaneseq
    %v110 = vshrl.u32 %v109, 7
    %v111 = vsub.s32 0, %v110
    %v112 = vrot.slane %v107, %v111
    %v118 = vunpack.c.l.b16 %v103
    %v119 = vunpack.c.l.b16 %v104
    %v120 = vunpack.c.l.b16 %v105
    %v121 = vunpack.c.l.b16 %v106
    %v122 = vpack.c.b16 %v119, %v118
    %v123 = vpack.c.b16 %v121, %v120
    %vm126 = vcmask 261120
    %v128 = vsel %vm126, %v102, 0
    %130 = vmatprep.subr.bf16.mxu0 0
    %131 = vmatpush1.bf16.msra.mxu0 0
    %132 = vmatprep.subr.bf16.mxu0 0
    %133 = vmatpush1.bf16.msra.mxu0 0
    %134 = vmatprep.subr.bf16.mxu0 0
    %135 = vmatpush1.bf16.msra.mxu0 0
    %136 = vmatprep.subr.bf16.mxu0 0
    %137 = vmatpush1.bf16.msra.mxu0 0
    %138 = vmatprep.subr.bf16.mxu0 0
    %139 = vmatpush1.bf16.msra.mxu0 0
    %140 = vmatprep.subr.bf16.mxu0 0
    %141 = vmatpush1.bf16.msra.mxu0 0
    %142 = vmatprep.subr.bf16.mxu0 0
    %143 = vmatpush1.bf16.msra.mxu0 %v123
    %144 = vmatprep.subr.bf16.mxu0 0
    %145 = vmatpush1.bf16.msra.mxu0 %v122
    %146 = vmatprep.subr.bf16.mxu0 0
    %147 = vmatpush2.bf16.msra.mxu0 0
    %148 = vmatprep.subr.bf16.mxu0 0
    %149 = vmatpush2.bf16.msra.mxu0 0
    %150 = vmatprep.subr.bf16.mxu0 0
    %151 = vmatpush2.bf16.msra.mxu0 0
    %152 = vmatprep.subr.bf16.mxu0 0
    %153 = vmatpush2.bf16.msra.mxu0 0
    %154 = vmatprep.subr.bf16.mxu0 0
    %155 = vmatpush2.bf16.msra.mxu0 0
    %156 = vmatprep.subr.bf16.mxu0 0
    %157 = vmatpush2.bf16.msra.mxu0 0
    %158 = vmatprep.subr.bf16.mxu0 0
    %159 = vmatpush2.bf16.msra.mxu0 0
    %160 = vmatprep.subr.bf16.mxu0 0
    %161 = vmatpush2.bf16.msra.mxu0 0
    %162 = vmatprep.mubr.bf16.mxu0 0
    %163 = vmatmul.mubr.bf16.gmra.mxu0 %v128
    %v164 = vpop.f32.mrf.mxu0
    %v165 = vadd.f32 %v112, %v164
    %v166 = vpop.f32.mrf.mxu0
    %v167 = vpop.f32.mrf.mxu0
    %v168 = vadd.f32 %v112, %v167
    %v169 = vpop.f32.mrf.mxu0
    %170 = vdwg.mxu0
    %v171 = vmax.f32 %v165, 0.0
    %v172 = vmax.f32 %v168, 0.0
    %v173 = vpack.c.bf16 %v172, %v171
    %v174 = vld [vmem:[#allocation8] sm:$0xf]
    %v175 = vld [vmem:[#allocation8 + $0x4] sm:$0xf]
    %v176 = vld [vmem:[#allocation8 + $0x8] sm:$0xf]
    %v177 = vld [vmem:[#allocation8 + $0xc] sm:$0xf]
    %v178 = vld [vmem:[#allocation8 + $0x10] sm:$0xf]
    %v179 = vld [vmem:[#allocation8 + $0x14] sm:$0xf]
    %v180 = vld [vmem:[#allocation8 + $0x18] sm:$0xf]
    %v181 = vld [vmem:[#allocation8 + $0x1c] sm:$0xf]
    %v182 = vld [vmem:[#allocation8 + $0x20] sm:$0xf]
    %v183 = vld [vmem:[#allocation8 + $0x24] sm:$0xf]
    %v184 = vld [vmem:[#allocation8 + $0x28] sm:$0xf]
    %v185 = vld [vmem:[#allocation8 + $0x2c] sm:$0xf]
    %v186 = vld [vmem:[#allocation8 + $0x30] sm:$0xf]
    %v187 = vld [vmem:[#allocation8 + $0x34] sm:$0xf]
    %v188 = vld [vmem:[#allocation8 + $0x38] sm:$0xf]
    %v189 = vld [vmem:[#allocation8 + $0x3c] sm:$0xf]
    %v190 = vld [vmem:[%s5] sm:$0x1]
    %v192 = vlaneseq
    %v193 = vshrl.u32 %v192, 7
    %v194 = vsub.s32 0, %v193
    %v195 = vrot.slane %v190, %v194
    %v213 = vunpack.c.l.b16 %v174
    %v214 = vunpack.c.l.b16 %v175
    %v215 = vunpack.c.l.b16 %v176
    %v216 = vunpack.c.l.b16 %v177
    %v217 = vunpack.c.l.b16 %v178
    %v218 = vunpack.c.l.b16 %v179
    %v219 = vunpack.c.l.b16 %v180
    %v220 = vunpack.c.l.b16 %v181
    %v221 = vunpack.c.l.b16 %v182
    %v222 = vunpack.c.l.b16 %v183
    %v223 = vunpack.c.l.b16 %v184
    %v224 = vunpack.c.l.b16 %v185
    %v225 = vunpack.c.l.b16 %v186
    %v226 = vunpack.c.l.b16 %v187
    %v227 = vunpack.c.l.b16 %v188
    %v228 = vunpack.c.l.b16 %v189
    %v229 = vpack.c.b16 %v214, %v213
    %v230 = vpack.c.b16 %v216, %v215
    %v231 = vpack.c.b16 %v218, %v217
    %v232 = vpack.c.b16 %v220, %v219
    %v233 = vpack.c.b16 %v222, %v221
    %v234 = vpack.c.b16 %v224, %v223
    %v235 = vpack.c.b16 %v226, %v225
    %v236 = vpack.c.b16 %v228, %v227
    %245 = vmatprep.subr.bf16.mxu0 0
    %246 = vmatpush1.bf16.msra.mxu0 %v236
    %247 = vmatprep.subr.bf16.mxu0 0
    %248 = vmatpush1.bf16.msra.mxu0 %v235
    %249 = vmatprep.subr.bf16.mxu0 0
    %250 = vmatpush1.bf16.msra.mxu0 %v234
    %251 = vmatprep.subr.bf16.mxu0 0
    %252 = vmatpush1.bf16.msra.mxu0 %v233
    %253 = vmatprep.subr.bf16.mxu0 0
    %254 = vmatpush1.bf16.msra.mxu0 %v232
    %255 = vmatprep.subr.bf16.mxu0 0
    %256 = vmatpush1.bf16.msra.mxu0 %v231
    %257 = vmatprep.subr.bf16.mxu0 0
    %258 = vmatpush1.bf16.msra.mxu0 %v230
    %259 = vmatprep.subr.bf16.mxu0 0
    %260 = vmatpush1.bf16.msra.mxu0 %v229
    %261 = vmatprep.subr.bf16.mxu0 0
    %262 = vmatpush2.bf16.msra.mxu0 0
    %263 = vmatprep.subr.bf16.mxu0 0
    %264 = vmatpush2.bf16.msra.mxu0 0
    %265 = vmatprep.subr.bf16.mxu0 0
    %266 = vmatpush2.bf16.msra.mxu0 0
    %267 = vmatprep.subr.bf16.mxu0 0
    %268 = vmatpush2.bf16.msra.mxu0 0
    %269 = vmatprep.subr.bf16.mxu0 0
    %270 = vmatpush2.bf16.msra.mxu0 0
    %271 = vmatprep.subr.bf16.mxu0 0
    %272 = vmatpush2.bf16.msra.mxu0 0
    %273 = vmatprep.subr.bf16.mxu0 0
    %274 = vmatpush2.bf16.msra.mxu0 0
    %275 = vmatprep.subr.bf16.mxu0 0
    %276 = vmatpush2.bf16.msra.mxu0 0
    %277 = vmatprep.mubr.bf16.mxu0 0
    %278 = vmatmul.mubr.bf16.gmra.mxu0 %v173
    %v279 = vpop.f32.mrf.mxu0
    %v280 = vadd.f32 %v195, %v279
    %v281 = vpop.f32.mrf.mxu0
    %v282 = vpop.f32.mrf.mxu0
    %v283 = vadd.f32 %v195, %v282
    %v284 = vpop.f32.mrf.mxu0
    %285 = vdwg.mxu0
    %v286 = vlaneseq
    %v287 = vand.u32 %v286, 127
    %288 = vmax.xlane.f32.xlu0 %v280
    %v289 = vpop.xlane.xlu0 %288
    %290 = vmax.xlane.f32.xlu0 %v283
    %v291 = vpop.xlane.xlu0 %290
    %vm292 = vcmp.eq.f32.partialorder %v280, %v289
    %vm293 = vcmp.eq.f32.partialorder %v283, %v291
    %v294 = vsel %vm292, %v287, 128
    %v295 = vsel %vm293, %v287, 128
    %v296 = vand.u32 %v294, 65535
    %v297 = vshra.s32 %v294, 16
    %v298 = vcvt.s32.f32 %v296
    %v299 = vcvt.s32.f32 %v297
    %300 = vmin.xlane.f32.xlu0 %v299
    %v301 = vpop.xlane.xlu0 %300
    %vm302 = vcmp.eq.f32.partialorder %v299, %v301
    %v303 = vsel %vm302, %v298, inf
    %304 = vmin.xlane.f32.xlu0 %v303
    %v305 = vpop.xlane.xlu0 %304
    %v306 = vcvt.f32.s32 %v305
    %v307 = vcvt.f32.s32 %v301
    %v308 = vshll.u32 %v307, 16
    %v309 = vadd.s32 %v308, %v306
    %v310 = vand.u32 %v295, 65535
    %v311 = vshra.s32 %v295, 16
    %v312 = vcvt.s32.f32 %v310
    %v313 = vcvt.s32.f32 %v311
    %314 = vmin.xlane.f32.xlu0 %v313
    %v315 = vpop.xlane.xlu0 %314
    %vm316 = vcmp.eq.f32.partialorder %v313, %v315
    %v317 = vsel %vm316, %v312, inf
    %318 = vmin.xlane.f32.xlu0 %v317
    %v319 = vpop.xlane.xlu0 %318
    %v320 = vcvt.f32.s32 %v319
    %v321 = vcvt.f32.s32 %v315
    %v322 = vshll.u32 %v321, 16
    %v323 = vadd.s32 %v322, %v320
    %vm324 = vcmp.eq.s32.totalorder %v287, %v309
    %vm325 = vcmp.eq.s32.totalorder %v287, %v323
    %v326 = vsel %vm324, 1, 0
    %v327 = vsel %vm325, 1, 0
    %v328 = vcvt.s32.f32 %v326
    %v329 = vcvt.s32.f32 %v327
    %v330 = vpack.c.bf16 %v329, %v328
    %v332 = vunpack.c.l.b16 %v330
    %v333 = vunpack.c.h.b16 %v330
    %v334 = vpack.c.b16 %v332, %v332
    %v335 = vpack.c.b16 %v333, %v333
    %338 = vst [vmem:[#allocation10] sm:$0xf] %v334
    %339 = vst [vmem:[#allocation10 + $0x4] sm:$0xf] %v335
    %s340 = sadd.s32 0, 0
    %s341 = smul.u32 %s340, 16
    %v342 = vlaneseq
    %v343 = vshrl.u32 %v342, 7
    %v344 = vadd.s32 %v343, 8
    %v345 = vstv %s341
    %v346 = vadd.s32 %v345, %v343
    %v347 = vadd.s32 %v345, %v344
    %vm348 = vcmp.lt.s32.totalorder %v346, 16
    %vm349 = vcmp.lt.s32.totalorder %v347, 16
    %v350 = vsel %vm348, 1, 0
    %v351 = vsel %vm349, 1, 0
    %vm352 = vcmp.eq.s32.totalorder %v350, 1
    %vm353 = vcmp.eq.s32.totalorder %v351, 1
    %vm354 = vmand %vm324, %vm352
    %vm355 = vmand %vm325, %vm353
    %v356 = vsel %vm354, 1, 0
    %v357 = vsel %vm355, 1, 0
    %v358 = vcvt.s32.f32 %v356
    %v359 = vcvt.s32.f32 %v357
    %p360 = scmp.eq.s32.totalorder 0, 0
    // Predicated region
    $region42: #{tpu_custom_call.1} parent=1 // pred_check
      %p361 = pneg %p360
    $region43: #{tpu_custom_call.1} parent=1 // pred_check_branch
      %363 = sbr.rel (%p361) target = $region45
    $region44: #{tpu_custom_call.1} parent=1 // pred_region
      %364 = vst.msk [vmem:[%s7] sm:$0xff] %vm126, 0.0
      %365 = vst.msk [vmem:[%s7 + $0x8] sm:$0xff] %vm126, 0.0
      %366 = vst.msk [vmem:[%s7 + $0x10] sm:$0xff] %vm126, 0.0
      %367 = vst.msk [vmem:[%s7 + $0x18] sm:$0xff] %vm126, 0.0
      %368 = vst.msk [vmem:[%s7 + $0x20] sm:$0xff] %vm126, 0.0
      %369 = vst.msk [vmem:[%s7 + $0x28] sm:$0xff] %vm126, 0.0
      %370 = vst.msk [vmem:[%s7 + $0x30] sm:$0xff] %vm126, 0.0
      %371 = vst.msk [vmem:[%s7 + $0x38] sm:$0xff] %vm126, 0.0
      %372 = vst.msk [vmem:[%s7 + $0x40] sm:$0xff] %vm126, 0.0
      %373 = vst.msk [vmem:[%s7 + $0x48] sm:$0xff] %vm126, 0.0
      %374 = vst.msk [vmem:[%s7 + $0x50] sm:$0xff] %vm126, 0.0
      %375 = vst.msk [vmem:[%s7 + $0x58] sm:$0xff] %vm126, 0.0
      %376 = vst.msk [vmem:[%s7 + $0x60] sm:$0xff] %vm126, 0.0
      %377 = vst.msk [vmem:[%s7 + $0x68] sm:$0xff] %vm126, 0.0
      %378 = vst.msk [vmem:[%s7 + $0x70] sm:$0xff] %vm126, 0.0
      %379 = vst.msk [vmem:[%s7 + $0x78] sm:$0xff] %vm126, 0.0
      %380 = vst.msk [vmem:[%s8] sm:$0xff] %vm126, 0.0
      %381 = vst.msk [vmem:[%s8 + $0x8] sm:$0xff] %vm126, 0.0
      %382 = vst.msk [vmem:[%s8 + $0x10] sm:$0xff] %vm126, 0.0
      %383 = vst.msk [vmem:[%s8 + $0x18] sm:$0xff] %vm126, 0.0
      %384 = vst.msk [vmem:[%s8 + $0x20] sm:$0xff] %vm126, 0.0
      %385 = vst.msk [vmem:[%s8 + $0x28] sm:$0xff] %vm126, 0.0
      %386 = vst.msk [vmem:[%s8 + $0x30] sm:$0xff] %vm126, 0.0
      %387 = vst.msk [vmem:[%s8 + $0x38] sm:$0xff] %vm126, 0.0
      %388 = vst.msk [vmem:[%s8 + $0x40] sm:$0xff] %vm126, 0.0
      %389 = vst.msk [vmem:[%s8 + $0x48] sm:$0xff] %vm126, 0.0
      %390 = vst.msk [vmem:[%s8 + $0x50] sm:$0xff] %vm126, 0.0
      %391 = vst.msk [vmem:[%s8 + $0x58] sm:$0xff] %vm126, 0.0
      %392 = vst.msk [vmem:[%s8 + $0x60] sm:$0xff] %vm126, 0.0
      %393 = vst.msk [vmem:[%s8 + $0x68] sm:$0xff] %vm126, 0.0
      %394 = vst.msk [vmem:[%s8 + $0x70] sm:$0xff] %vm126, 0.0
      %395 = vst.msk [vmem:[%s8 + $0x78] sm:$0xff] %vm126, 0.0
      %vm396 = vcmask 7168
      %397 = vst.msk [vmem:[%s9] sm:$0xff] %vm396, 0.0
      %398 = vst.msk [vmem:[%s9 + $0x8] sm:$0xff] %vm396, 0.0
      %399 = vst.msk [vmem:[%s9 + $0x10] sm:$0xff] %vm396, 0.0
      %400 = vst.msk [vmem:[%s9 + $0x18] sm:$0xff] %vm396, 0.0
      %401 = vst.msk [vmem:[%s9 + $0x20] sm:$0xff] %vm396, 0.0
      %402 = vst.msk [vmem:[%s9 + $0x28] sm:$0xff] %vm396, 0.0
      %403 = vst.msk [vmem:[%s9 + $0x30] sm:$0xff] %vm396, 0.0
      %404 = vst.msk [vmem:[%s9 + $0x38] sm:$0xff] %vm396, 0.0
      %405 = vst.msk [vmem:[%s9 + $0x40] sm:$0xff] %vm396, 0.0
      %406 = vst.msk [vmem:[%s9 + $0x48] sm:$0xff] %vm396, 0.0
      %407 = vst.msk [vmem:[%s9 + $0x50] sm:$0xff] %vm396, 0.0
      %408 = vst.msk [vmem:[%s9 + $0x58] sm:$0xff] %vm396, 0.0
      %409 = vst.msk [vmem:[%s9 + $0x60] sm:$0xff] %vm396, 0.0
      %410 = vst.msk [vmem:[%s9 + $0x68] sm:$0xff] %vm396, 0.0
      %411 = vst.msk [vmem:[%s9 + $0x70] sm:$0xff] %vm396, 0.0
      %412 = vst.msk [vmem:[%s9 + $0x78] sm:$0xff] %vm396, 0.0
    $region45: #{tpu_custom_call.1} parent=1 // pred_fallthru
      _
    %v413 = vld [vmem:[%s7] sm:$0xff]
    %v414 = vld [vmem:[%s7 + $0x8] sm:$0xff]
    %v415 = vld [vmem:[%s7 + $0x10] sm:$0xff]
    %v416 = vld [vmem:[%s7 + $0x18] sm:$0xff]
    %v417 = vld [vmem:[%s7 + $0x20] sm:$0xff]
    %v418 = vld [vmem:[%s7 + $0x28] sm:$0xff]
    %v419 = vld [vmem:[%s7 + $0x30] sm:$0xff]
    %v420 = vld [vmem:[%s7 + $0x38] sm:$0xff]
    %v421 = vld [vmem:[%s7 + $0x40] sm:$0xff]
    %v422 = vld [vmem:[%s7 + $0x48] sm:$0xff]
    %v423 = vld [vmem:[%s7 + $0x50] sm:$0xff]
    %v424 = vld [vmem:[%s7 + $0x58] sm:$0xff]
    %v425 = vld [vmem:[%s7 + $0x60] sm:$0xff]
    %v426 = vld [vmem:[%s7 + $0x68] sm:$0xff]
    %v427 = vld [vmem:[%s7 + $0x70] sm:$0xff]
    %v428 = vld [vmem:[%s7 + $0x78] sm:$0xff]
    %429 = vxpose.xlu0.b32.start [1/16] %v358, 128
    %430 = vxpose.xlu0.b32.cont [2/16] %v359, 128
    %431 = vxpose.xlu0.b32.cont [3/16] 0.0, 128
    %432 = vxpose.xlu0.b32.cont [4/16] 0.0, 128
    %433 = vxpose.xlu0.b32.cont [5/16] 0.0, 128
    %434 = vxpose.xlu0.b32.cont [6/16] 0.0, 128
    %435 = vxpose.xlu0.b32.cont [7/16] 0.0, 128
    %436 = vxpose.xlu0.b32.cont [8/16] 0.0, 128
    %437 = vxpose.xlu0.b32.cont [9/16] 0.0, 128
    %438 = vxpose.xlu0.b32.cont [10/16] 0.0, 128
    %439 = vxpose.xlu0.b32.cont [11/16] 0.0, 128
    %440 = vxpose.xlu0.b32.cont [12/16] 0.0, 128
    %441 = vxpose.xlu0.b32.cont [13/16] 0.0, 128
    %442 = vxpose.xlu0.b32.cont [14/16] 0.0, 128
    %443 = vxpose.xlu0.b32.cont [15/16] 0.0, 128
    %444 = vxpose.xlu0.b32.end [16/16] 0.0, 128
    %v445 = vpop.trf.xlu0
    %v446 = vpop.trf.xlu0
    %v447 = vpop.trf.xlu0
    %v448 = vpop.trf.xlu0
    %v449 = vpop.trf.xlu0
    %v450 = vpop.trf.xlu0
    %v451 = vpop.trf.xlu0
    %v452 = vpop.trf.xlu0
    %v453 = vpop.trf.xlu0
    %v454 = vpop.trf.xlu0
    %v455 = vpop.trf.xlu0
    %v456 = vpop.trf.xlu0
    %v457 = vpop.trf.xlu0
    %v458 = vpop.trf.xlu0
    %v459 = vpop.trf.xlu0
    %v460 = vpop.trf.xlu0
    %vm461 = vcmask 130048
    %v463 = vsel %vm461, %v445, 0
    %v466 = vsel %vm461, %v446, 0
    %v469 = vsel %vm461, %v447, 0
    %v472 = vsel %vm461, %v448, 0
    %v475 = vsel %vm461, %v449, 0
    %v478 = vsel %vm461, %v450, 0
    %v481 = vsel %vm461, %v451, 0
    %v484 = vsel %vm461, %v452, 0
    %v487 = vsel %vm461, %v453, 0
    %v490 = vsel %vm461, %v454, 0
    %v493 = vsel %vm461, %v455, 0
    %v496 = vsel %vm461, %v456, 0
    %v499 = vsel %vm461, %v457, 0
    %v502 = vsel %vm461, %v458, 0
    %v505 = vsel %vm461, %v459, 0
    %v508 = vsel %vm461, %v460, 0
    %510 = vmatprep.subr.mxu0 0.0
    %511 = vmatpush1.msra.mxu0 0.0
    %512 = vmatprep.subr.mxu0 0.0
    %513 = vmatpush1.msra.mxu0 0.0
    %514 = vmatprep.subr.mxu0 0.0
    %515 = vmatpush1.msra.mxu0 0.0
    %516 = vmatprep.subr.mxu0 0.0
    %517 = vmatpush1.msra.mxu0 0.0
    %518 = vmatprep.subr.mxu0 0.0
    %519 = vmatpush1.msra.mxu0 0.0
    %520 = vmatprep.subr.mxu0 0.0
    %521 = vmatpush1.msra.mxu0 0.0
    %522 = vmatprep.subr.mxu0 0.0
    %523 = vmatpush1.msra.mxu0 0.0
    %524 = vmatprep.subr.mxu0 0.0
    %525 = vmatpush1.msra.mxu0 0.0
    %526 = vmatprep.subr.mxu0 0.0
    %527 = vmatpush1.msra.mxu0 0.0
    %528 = vmatprep.subr.mxu0 0.0
    %529 = vmatpush1.msra.mxu0 0.0
    %530 = vmatprep.subr.mxu0 0.0
    %531 = vmatpush1.msra.mxu0 0.0
    %532 = vmatprep.subr.mxu0 0.0
    %533 = vmatpush1.msra.mxu0 0.0
    %534 = vmatprep.subr.mxu0 0.0
    %535 = vmatpush1.msra.mxu0 0.0
    %536 = vmatprep.subr.mxu0 0.0
    %537 = vmatpush1.msra.mxu0 0.0
    %538 = vmatprep.subr.mxu0 0.0
    %539 = vmatpush1.msra.mxu0 %v99
    %540 = vmatprep.subr.mxu0 0.0
    %541 = vmatpush1.msra.mxu0 %v98
    %542 = vmatprep.subr.mxu0 0.0
    %543 = vmatpush2.msra.mxu0 0.0
    %544 = vmatprep.subr.mxu0 0.0
    %545 = vmatpush2.msra.mxu0 0.0
    %546 = vmatprep.subr.mxu0 0.0
    %547 = vmatpush2.msra.mxu0 0.0
    %548 = vmatprep.subr.mxu0 0.0
    %549 = vmatpush2.msra.mxu0 0.0
    %550 = vmatprep.subr.mxu0 0.0
    %551 = vmatpush2.msra.mxu0 0.0
    %552 = vmatprep.subr.mxu0 0.0
    %553 = vmatpush2.msra.mxu0 0.0
    %554 = vmatprep.subr.mxu0 0.0
    %555 = vmatpush2.msra.mxu0 0.0
    %556 = vmatprep.subr.mxu0 0.0
    %557 = vmatpush2.msra.mxu0 0.0
    %558 = vmatprep.subr.mxu0 0.0
    %559 = vmatpush2.msra.mxu0 0.0
    %560 = vmatprep.subr.mxu0 0.0
    %561 = vmatpush2.msra.mxu0 0.0
    %562 = vmatprep.subr.mxu0 0.0
    %563 = vmatpush2.msra.mxu0 0.0
    %564 = vmatprep.subr.mxu0 0.0
    %565 = vmatpush2.msra.mxu0 0.0
    %566 = vmatprep.subr.mxu0 0.0
    %567 = vmatpush2.msra.mxu0 0.0
    %568 = vmatprep.subr.mxu0 0.0
    %569 = vmatpush2.msra.mxu0 0.0
    %570 = vmatprep.subr.mxu0 0.0
    %571 = vmatpush2.msra.mxu0 0.0
    %572 = vmatprep.subr.mxu0 0.0
    %573 = vmatpush2.msra.mxu0 0.0
    %574 = vmatprep.mubr.f32.mxu0 0.0
    %575 = vmatmul.mubr.f32.gmra.mxu0 %v463
    %v576 = vpop.f32.mrf.mxu0
    %v577 = vadd.f32 0.0, %v576
    %v578 = vpop.f32.mrf.mxu0
    %579 = vmatprep.mubr.f32.mxu0 0.0
    %580 = vmatmul.mubr.f32.gmra.mxu0 %v466
    %v581 = vpop.f32.mrf.mxu0
    %v582 = vadd.f32 0.0, %v581
    %v583 = vpop.f32.mrf.mxu0
    %584 = vmatprep.mubr.f32.mxu0 0.0
    %585 = vmatmul.mubr.f32.gmra.mxu0 %v469
    %v586 = vpop.f32.mrf.mxu0
    %v587 = vadd.f32 0.0, %v586
    %v588 = vpop.f32.mrf.mxu0
    %589 = vmatprep.mubr.f32.mxu0 0.0
    %590 = vmatmul.mubr.f32.gmra.mxu0 %v472
    %v591 = vpop.f32.mrf.mxu0
    %v592 = vadd.f32 0.0, %v591
    %v593 = vpop.f32.mrf.mxu0
    %594 = vmatprep.mubr.f32.mxu0 0.0
    %595 = vmatmul.mubr.f32.gmra.mxu0 %v475
    %v596 = vpop.f32.mrf.mxu0
    %v597 = vadd.f32 0.0, %v596
    %v598 = vpop.f32.mrf.mxu0
    %599 = vmatprep.mubr.f32.mxu0 0.0
    %600 = vmatmul.mubr.f32.gmra.mxu0 %v478
    %v601 = vpop.f32.mrf.mxu0
    %v602 = vadd.f32 0.0, %v601
    %v603 = vpop.f32.mrf.mxu0
    %604 = vmatprep.mubr.f32.mxu0 0.0
    %605 = vmatmul.mubr.f32.gmra.mxu0 %v481
    %v606 = vpop.f32.mrf.mxu0
    %v607 = vadd.f32 0.0, %v606
    %v608 = vpop.f32.mrf.mxu0
    %609 = vmatprep.mubr.f32.mxu0 0.0
    %610 = vmatmul.mubr.f32.gmra.mxu0 %v484
    %v611 = vpop.f32.mrf.mxu0
    %v612 = vadd.f32 0.0, %v611
    %v613 = vpop.f32.mrf.mxu0
    %614 = vmatprep.mubr.f32.mxu0 0.0
    %615 = vmatmul.mubr.f32.gmra.mxu0 %v487
    %v616 = vpop.f32.mrf.mxu0
    %v617 = vadd.f32 0.0, %v616
    %v618 = vpop.f32.mrf.mxu0
    %619 = vmatprep.mubr.f32.mxu0 0.0
    %620 = vmatmul.mubr.f32.gmra.mxu0 %v490
    %v621 = vpop.f32.mrf.mxu0
    %v622 = vadd.f32 0.0, %v621
    %v623 = vpop.f32.mrf.mxu0
    %624 = vmatprep.mubr.f32.mxu0 0.0
    %625 = vmatmul.mubr.f32.gmra.mxu0 %v493
    %v626 = vpop.f32.mrf.mxu0
    %v627 = vadd.f32 0.0, %v626
    %v628 = vpop.f32.mrf.mxu0
    %629 = vmatprep.mubr.f32.mxu0 0.0
    %630 = vmatmul.mubr.f32.gmra.mxu0 %v496
    %v631 = vpop.f32.mrf.mxu0
    %v632 = vadd.f32 0.0, %v631
    %v633 = vpop.f32.mrf.mxu0
    %634 = vmatprep.mubr.f32.mxu0 0.0
    %635 = vmatmul.mubr.f32.gmra.mxu0 %v499
    %v636 = vpop.f32.mrf.mxu0
    %v637 = vadd.f32 0.0, %v636
    %v638 = vpop.f32.mrf.mxu0
    %639 = vmatprep.mubr.f32.mxu0 0.0
    %640 = vmatmul.mubr.f32.gmra.mxu0 %v502
    %v641 = vpop.f32.mrf.mxu0
    %v642 = vadd.f32 0.0, %v641
    %v643 = vpop.f32.mrf.mxu0
    %644 = vmatprep.mubr.f32.mxu0 0.0
    %645 = vmatmul.mubr.f32.gmra.mxu0 %v505
    %v646 = vpop.f32.mrf.mxu0
    %v647 = vadd.f32 0.0, %v646
    %v648 = vpop.f32.mrf.mxu0
    %649 = vmatprep.mubr.f32.mxu0 0.0
    %650 = vmatmul.mubr.f32.gmra.mxu0 %v508
    %v651 = vpop.f32.mrf.mxu0
    %v652 = vadd.f32 0.0, %v651
    %v653 = vpop.f32.mrf.mxu0
    %654 = vdwg.mxu0
    %v655 = vadd.f32 %v413, %v577
    %v656 = vadd.f32 %v414, %v582
    %v657 = vadd.f32 %v415, %v587
    %v658 = vadd.f32 %v416, %v592
    %v659 = vadd.f32 %v417, %v597
    %v660 = vadd.f32 %v418, %v602
    %v661 = vadd.f32 %v419, %v607
    %v662 = vadd.f32 %v420, %v612
    %v663 = vadd.f32 %v421, %v617
    %v664 = vadd.f32 %v422, %v622
    %v665 = vadd.f32 %v423, %v627
    %v666 = vadd.f32 %v424, %v632
    %v667 = vadd.f32 %v425, %v637
    %v668 = vadd.f32 %v426, %v642
    %v669 = vadd.f32 %v427, %v647
    %v670 = vadd.f32 %v428, %v652
    %671 = vst.msk [vmem:[%s7] sm:$0xff] %vm126, %v655
    %672 = vst.msk [vmem:[%s7 + $0x8] sm:$0xff] %vm126, %v656
    %673 = vst.msk [vmem:[%s7 + $0x10] sm:$0xff] %vm126, %v657
    %674 = vst.msk [vmem:[%s7 + $0x18] sm:$0xff] %vm126, %v658
    %675 = vst.msk [vmem:[%s7 + $0x20] sm:$0xff] %vm126, %v659
    %676 = vst.msk [vmem:[%s7 + $0x28] sm:$0xff] %vm126, %v660
    %677 = vst.msk [vmem:[%s7 + $0x30] sm:$0xff] %vm126, %v661
    %678 = vst.msk [vmem:[%s7 + $0x38] sm:$0xff] %vm126, %v662
    %679 = vst.msk [vmem:[%s7 + $0x40] sm:$0xff] %vm126, %v663
    %680 = vst.msk [vmem:[%s7 + $0x48] sm:$0xff] %vm126, %v664
    %681 = vst.msk [vmem:[%s7 + $0x50] sm:$0xff] %vm126, %v665
    %682 = vst.msk [vmem:[%s7 + $0x58] sm:$0xff] %vm126, %v666
    %683 = vst.msk [vmem:[%s7 + $0x60] sm:$0xff] %vm126, %v667
    %684 = vst.msk [vmem:[%s7 + $0x68] sm:$0xff] %vm126, %v668
    %685 = vst.msk [vmem:[%s7 + $0x70] sm:$0xff] %vm126, %v669
    %686 = vst.msk [vmem:[%s7 + $0x78] sm:$0xff] %vm126, %v670
    %v687 = vld [vmem:[%s8] sm:$0xff]
    %v688 = vld [vmem:[%s8 + $0x8] sm:$0xff]
    %v689 = vld [vmem:[%s8 + $0x10] sm:$0xff]
    %v690 = vld [vmem:[%s8 + $0x18] sm:$0xff]
    %v691 = vld [vmem:[%s8 + $0x20] sm:$0xff]
    %v692 = vld [vmem:[%s8 + $0x28] sm:$0xff]
    %v693 = vld [vmem:[%s8 + $0x30] sm:$0xff]
    %v694 = vld [vmem:[%s8 + $0x38] sm:$0xff]
    %v695 = vld [vmem:[%s8 + $0x40] sm:$0xff]
    %v696 = vld [vmem:[%s8 + $0x48] sm:$0xff]
    %v697 = vld [vmem:[%s8 + $0x50] sm:$0xff]
    %v698 = vld [vmem:[%s8 + $0x58] sm:$0xff]
    %v699 = vld [vmem:[%s8 + $0x60] sm:$0xff]
    %v700 = vld [vmem:[%s8 + $0x68] sm:$0xff]
    %v701 = vld [vmem:[%s8 + $0x70] sm:$0xff]
    %v702 = vld [vmem:[%s8 + $0x78] sm:$0xff]
    %703 = vmatprep.subr.mxu0 0.0
    %704 = vmatpush1.msra.mxu0 0.0
    %705 = vmatprep.subr.mxu0 0.0
    %706 = vmatpush1.msra.mxu0 0.0
    %707 = vmatprep.subr.mxu0 0.0
    %708 = vmatpush1.msra.mxu0 0.0
    %709 = vmatprep.subr.mxu0 0.0
    %710 = vmatpush1.msra.mxu0 0.0
    %711 = vmatprep.subr.mxu0 0.0
    %712 = vmatpush1.msra.mxu0 0.0
    %713 = vmatprep.subr.mxu0 0.0
    %714 = vmatpush1.msra.mxu0 0.0
    %715 = vmatprep.subr.mxu0 0.0
    %716 = vmatpush1.msra.mxu0 0.0
    %717 = vmatprep.subr.mxu0 0.0
    %718 = vmatpush1.msra.mxu0 0.0
    %719 = vmatprep.subr.mxu0 0.0
    %720 = vmatpush1.msra.mxu0 0.0
    %721 = vmatprep.subr.mxu0 0.0
    %722 = vmatpush1.msra.mxu0 0.0
    %723 = vmatprep.subr.mxu0 0.0
    %724 = vmatpush1.msra.mxu0 0.0
    %725 = vmatprep.subr.mxu0 0.0
    %726 = vmatpush1.msra.mxu0 0.0
    %727 = vmatprep.subr.mxu0 0.0
    %728 = vmatpush1.msra.mxu0 0.0
    %729 = vmatprep.subr.mxu0 0.0
    %730 = vmatpush1.msra.mxu0 0.0
    %731 = vmatprep.subr.mxu0 0.0
    %732 = vmatpush1.msra.mxu0 %v101
    %733 = vmatprep.subr.mxu0 0.0
    %734 = vmatpush1.msra.mxu0 %v100
    %735 = vmatprep.subr.mxu0 0.0
    %736 = vmatpush2.msra.mxu0 0.0
    %737 = vmatprep.subr.mxu0 0.0
    %738 = vmatpush2.msra.mxu0 0.0
    %739 = vmatprep.subr.mxu0 0.0
    %740 = vmatpush2.msra.mxu0 0.0
    %741 = vmatprep.subr.mxu0 0.0
    %742 = vmatpush2.msra.mxu0 0.0
    %743 = vmatprep.subr.mxu0 0.0
    %744 = vmatpush2.msra.mxu0 0.0
    %745 = vmatprep.subr.mxu0 0.0
    %746 = vmatpush2.msra.mxu0 0.0
    %747 = vmatprep.subr.mxu0 0.0
    %748 = vmatpush2.msra.mxu0 0.0
    %749 = vmatprep.subr.mxu0 0.0
    %750 = vmatpush2.msra.mxu0 0.0
    %751 = vmatprep.subr.mxu0 0.0
    %752 = vmatpush2.msra.mxu0 0.0
    %753 = vmatprep.subr.mxu0 0.0
    %754 = vmatpush2.msra.mxu0 0.0
    %755 = vmatprep.subr.mxu0 0.0
    %756 = vmatpush2.msra.mxu0 0.0
    %757 = vmatprep.subr.mxu0 0.0
    %758 = vmatpush2.msra.mxu0 0.0
    %759 = vmatprep.subr.mxu0 0.0
    %760 = vmatpush2.msra.mxu0 0.0
    %761 = vmatprep.subr.mxu0 0.0
    %762 = vmatpush2.msra.mxu0 0.0
    %763 = vmatprep.subr.mxu0 0.0
    %764 = vmatpush2.msra.mxu0 0.0
    %765 = vmatprep.subr.mxu0 0.0
    %766 = vmatpush2.msra.mxu0 0.0
    %767 = vmatprep.mubr.f32.mxu0 0.0
    %768 = vmatmul.mubr.f32.gmra.mxu0 %v463
    %v769 = vpop.f32.mrf.mxu0
    %v770 = vadd.f32 0.0, %v769
    %v771 = vpop.f32.mrf.mxu0
    %772 = vmatprep.mubr.f32.mxu0 0.0
    %773 = vmatmul.mubr.f32.gmra.mxu0 %v466
    %v774 = vpop.f32.mrf.mxu0
    %v775 = vadd.f32 0.0, %v774
    %v776 = vpop.f32.mrf.mxu0
    %777 = vmatprep.mubr.f32.mxu0 0.0
    %778 = vmatmul.mubr.f32.gmra.mxu0 %v469
    %v779 = vpop.f32.mrf.mxu0
    %v780 = vadd.f32 0.0, %v779
    %v781 = vpop.f32.mrf.mxu0
    %782 = vmatprep.mubr.f32.mxu0 0.0
    %783 = vmatmul.mubr.f32.gmra.mxu0 %v472
    %v784 = vpop.f32.mrf.mxu0
    %v785 = vadd.f32 0.0, %v784
    %v786 = vpop.f32.mrf.mxu0
    %787 = vmatprep.mubr.f32.mxu0 0.0
    %788 = vmatmul.mubr.f32.gmra.mxu0 %v475
    %v789 = vpop.f32.mrf.mxu0
    %v790 = vadd.f32 0.0, %v789
    %v791 = vpop.f32.mrf.mxu0
    %792 = vmatprep.mubr.f32.mxu0 0.0
    %793 = vmatmul.mubr.f32.gmra.mxu0 %v478
    %v794 = vpop.f32.mrf.mxu0
    %v795 = vadd.f32 0.0, %v794
    %v796 = vpop.f32.mrf.mxu0
    %797 = vmatprep.mubr.f32.mxu0 0.0
    %798 = vmatmul.mubr.f32.gmra.mxu0 %v481
    %v799 = vpop.f32.mrf.mxu0
    %v800 = vadd.f32 0.0, %v799
    %v801 = vpop.f32.mrf.mxu0
    %802 = vmatprep.mubr.f32.mxu0 0.0
    %803 = vmatmul.mubr.f32.gmra.mxu0 %v484
    %v804 = vpop.f32.mrf.mxu0
    %v805 = vadd.f32 0.0, %v804
    %v806 = vpop.f32.mrf.mxu0
    %807 = vmatprep.mubr.f32.mxu0 0.0
    %808 = vmatmul.mubr.f32.gmra.mxu0 %v487
    %v809 = vpop.f32.mrf.mxu0
    %v810 = vadd.f32 0.0, %v809
    %v811 = vpop.f32.mrf.mxu0
    %812 = vmatprep.mubr.f32.mxu0 0.0
    %813 = vmatmul.mubr.f32.gmra.mxu0 %v490
    %v814 = vpop.f32.mrf.mxu0
    %v815 = vadd.f32 0.0, %v814
    %v816 = vpop.f32.mrf.mxu0
    %817 = vmatprep.mubr.f32.mxu0 0.0
    %818 = vmatmul.mubr.f32.gmra.mxu0 %v493
    %v819 = vpop.f32.mrf.mxu0
    %v820 = vadd.f32 0.0, %v819
    %v821 = vpop.f32.mrf.mxu0
    %822 = vmatprep.mubr.f32.mxu0 0.0
    %823 = vmatmul.mubr.f32.gmra.mxu0 %v496
    %v824 = vpop.f32.mrf.mxu0
    %v825 = vadd.f32 0.0, %v824
    %v826 = vpop.f32.mrf.mxu0
    %827 = vmatprep.mubr.f32.mxu0 0.0
    %828 = vmatmul.mubr.f32.gmra.mxu0 %v499
    %v829 = vpop.f32.mrf.mxu0
    %v830 = vadd.f32 0.0, %v829
    %v831 = vpop.f32.mrf.mxu0
    %832 = vmatprep.mubr.f32.mxu0 0.0
    %833 = vmatmul.mubr.f32.gmra.mxu0 %v502
    %v834 = vpop.f32.mrf.mxu0
    %v835 = vadd.f32 0.0, %v834
    %v836 = vpop.f32.mrf.mxu0
    %837 = vmatprep.mubr.f32.mxu0 0.0
    %838 = vmatmul.mubr.f32.gmra.mxu0 %v505
    %v839 = vpop.f32.mrf.mxu0
    %v840 = vadd.f32 0.0, %v839
    %v841 = vpop.f32.mrf.mxu0
    %842 = vmatprep.mubr.f32.mxu0 0.0
    %843 = vmatmul.mubr.f32.gmra.mxu0 %v508
    %v844 = vpop.f32.mrf.mxu0
    %v845 = vadd.f32 0.0, %v844
    %v846 = vpop.f32.mrf.mxu0
    %847 = vdwg.mxu0
    %v848 = vadd.f32 %v687, %v770
    %v849 = vadd.f32 %v688, %v775
    %v850 = vadd.f32 %v689, %v780
    %v851 = vadd.f32 %v690, %v785
    %v852 = vadd.f32 %v691, %v790
    %v853 = vadd.f32 %v692, %v795
    %v854 = vadd.f32 %v693, %v800
    %v855 = vadd.f32 %v694, %v805
    %v856 = vadd.f32 %v695, %v810
    %v857 = vadd.f32 %v696, %v815
    %v858 = vadd.f32 %v697, %v820
    %v859 = vadd.f32 %v698, %v825
    %v860 = vadd.f32 %v699, %v830
    %v861 = vadd.f32 %v700, %v835
    %v862 = vadd.f32 %v701, %v840
    %v863 = vadd.f32 %v702, %v845
    %864 = vst.msk [vmem:[%s8] sm:$0xff] %vm126, %v848
    %865 = vst.msk [vmem:[%s8 + $0x8] sm:$0xff] %vm126, %v849
    %866 = vst.msk [vmem:[%s8 + $0x10] sm:$0xff] %vm126, %v850
    %867 = vst.msk [vmem:[%s8 + $0x18] sm:$0xff] %vm126, %v851
    %868 = vst.msk [vmem:[%s8 + $0x20] sm:$0xff] %vm126, %v852
    %869 = vst.msk [vmem:[%s8 + $0x28] sm:$0xff] %vm126, %v853
    %870 = vst.msk [vmem:[%s8 + $0x30] sm:$0xff] %vm126, %v854
    %871 = vst.msk [vmem:[%s8 + $0x38] sm:$0xff] %vm126, %v855
    %872 = vst.msk [vmem:[%s8 + $0x40] sm:$0xff] %vm126, %v856
    %873 = vst.msk [vmem:[%s8 + $0x48] sm:$0xff] %vm126, %v857
    %874 = vst.msk [vmem:[%s8 + $0x50] sm:$0xff] %vm126, %v858
    %875 = vst.msk [vmem:[%s8 + $0x58] sm:$0xff] %vm126, %v859
    %876 = vst.msk [vmem:[%s8 + $0x60] sm:$0xff] %vm126, %v860
    %877 = vst.msk [vmem:[%s8 + $0x68] sm:$0xff] %vm126, %v861
    %878 = vst.msk [vmem:[%s8 + $0x70] sm:$0xff] %vm126, %v862
    %879 = vst.msk [vmem:[%s8 + $0x78] sm:$0xff] %vm126, %v863
    %v880 = vld [vmem:[%s9] sm:$0xff]
    %v881 = vld [vmem:[%s9 + $0x8] sm:$0xff]
    %v882 = vld [vmem:[%s9 + $0x10] sm:$0xff]
    %v883 = vld [vmem:[%s9 + $0x18] sm:$0xff]
    %v884 = vld [vmem:[%s9 + $0x20] sm:$0xff]
    %v885 = vld [vmem:[%s9 + $0x28] sm:$0xff]
    %v886 = vld [vmem:[%s9 + $0x30] sm:$0xff]
    %v887 = vld [vmem:[%s9 + $0x38] sm:$0xff]
    %v888 = vld [vmem:[%s9 + $0x40] sm:$0xff]
    %v889 = vld [vmem:[%s9 + $0x48] sm:$0xff]
    %v890 = vld [vmem:[%s9 + $0x50] sm:$0xff]
    %v891 = vld [vmem:[%s9 + $0x58] sm:$0xff]
    %v892 = vld [vmem:[%s9 + $0x60] sm:$0xff]
    %v893 = vld [vmem:[%s9 + $0x68] sm:$0xff]
    %v894 = vld [vmem:[%s9 + $0x70] sm:$0xff]
    %v895 = vld [vmem:[%s9 + $0x78] sm:$0xff]
    %896 = vmatprep.subr.mxu0 0.0
    %897 = vmatpush1.msra.mxu0 0.0
    %898 = vmatprep.subr.mxu0 0.0
    %899 = vmatpush1.msra.mxu0 0.0
    %900 = vmatprep.subr.mxu0 0.0
    %901 = vmatpush1.msra.mxu0 0.0
    %902 = vmatprep.subr.mxu0 0.0
    %903 = vmatpush1.msra.mxu0 0.0
    %904 = vmatprep.subr.mxu0 0.0
    %905 = vmatpush1.msra.mxu0 0.0
    %906 = vmatprep.subr.mxu0 0.0
    %907 = vmatpush1.msra.mxu0 0.0
    %908 = vmatprep.subr.mxu0 0.0
    %909 = vmatpush1.msra.mxu0 0.0
    %910 = vmatprep.subr.mxu0 0.0
    %911 = vmatpush1.msra.mxu0 0.0
    %912 = vmatprep.subr.mxu0 0.0
    %913 = vmatpush1.msra.mxu0 0.0
    %914 = vmatprep.subr.mxu0 0.0
    %915 = vmatpush1.msra.mxu0 0.0
    %916 = vmatprep.subr.mxu0 0.0
    %917 = vmatpush1.msra.mxu0 0.0
    %918 = vmatprep.subr.mxu0 0.0
    %919 = vmatpush1.msra.mxu0 0.0
    %920 = vmatprep.subr.mxu0 0.0
    %921 = vmatpush1.msra.mxu0 0.0
    %922 = vmatprep.subr.mxu0 0.0
    %923 = vmatpush1.msra.mxu0 0.0
    %924 = vmatprep.subr.mxu0 0.0
    %925 = vmatpush1.msra.mxu0 1.0
    %926 = vmatprep.subr.mxu0 0.0
    %927 = vmatpush1.msra.mxu0 1.0
    %928 = vmatprep.subr.mxu0 0.0
    %929 = vmatpush2.msra.mxu0 0.0
    %930 = vmatprep.subr.mxu0 0.0
    %931 = vmatpush2.msra.mxu0 0.0
    %932 = vmatprep.subr.mxu0 0.0
    %933 = vmatpush2.msra.mxu0 0.0
    %934 = vmatprep.subr.mxu0 0.0
    %935 = vmatpush2.msra.mxu0 0.0
    %936 = vmatprep.subr.mxu0 0.0
    %937 = vmatpush2.msra.mxu0 0.0
    %938 = vmatprep.subr.mxu0 0.0
    %939 = vmatpush2.msra.mxu0 0.0
    %940 = vmatprep.subr.mxu0 0.0
    %941 = vmatpush2.msra.mxu0 0.0
    %942 = vmatprep.subr.mxu0 0.0
    %943 = vmatpush2.msra.mxu0 0.0
    %944 = vmatprep.subr.mxu0 0.0
    %945 = vmatpush2.msra.mxu0 0.0
    %946 = vmatprep.subr.mxu0 0.0
    %947 = vmatpush2.msra.mxu0 0.0
    %948 = vmatprep.subr.mxu0 0.0
    %949 = vmatpush2.msra.mxu0 0.0
    %950 = vmatprep.subr.mxu0 0.0
    %951 = vmatpush2.msra.mxu0 0.0
    %952 = vmatprep.subr.mxu0 0.0
    %953 = vmatpush2.msra.mxu0 0.0
    %954 = vmatprep.subr.mxu0 0.0
    %955 = vmatpush2.msra.mxu0 0.0
    %956 = vmatprep.subr.mxu0 0.0
    %957 = vmatpush2.msra.mxu0 0.0
    %958 = vmatprep.subr.mxu0 0.0
    %959 = vmatpush2.msra.mxu0 0.0
    %960 = vmatprep.mubr.f32.mxu0 0.0
    %961 = vmatmul.mubr.f32.gmra.mxu0 %v463
    %v962 = vpop.f32.mrf.mxu0
    %v963 = vadd.f32 0.0, %v962
    %v964 = vpop.f32.mrf.mxu0
    %965 = vmatprep.mubr.f32.mxu0 0.0
    %966 = vmatmul.mubr.f32.gmra.mxu0 %v466
    %v967 = vpop.f32.mrf.mxu0
    %v968 = vadd.f32 0.0, %v967
    %v969 = vpop.f32.mrf.mxu0
    %970 = vmatprep.mubr.f32.mxu0 0.0
    %971 = vmatmul.mubr.f32.gmra.mxu0 %v469
    %v972 = vpop.f32.mrf.mxu0
    %v973 = vadd.f32 0.0, %v972
    %v974 = vpop.f32.mrf.mxu0
    %975 = vmatprep.mubr.f32.mxu0 0.0
    %976 = vmatmul.mubr.f32.gmra.mxu0 %v472
    %v977 = vpop.f32.mrf.mxu0
    %v978 = vadd.f32 0.0, %v977
    %v979 = vpop.f32.mrf.mxu0
    %980 = vmatprep.mubr.f32.mxu0 0.0
    %981 = vmatmul.mubr.f32.gmra.mxu0 %v475
    %v982 = vpop.f32.mrf.mxu0
    %v983 = vadd.f32 0.0, %v982
    %v984 = vpop.f32.mrf.mxu0
    %985 = vmatprep.mubr.f32.mxu0 0.0
    %986 = vmatmul.mubr.f32.gmra.mxu0 %v478
    %v987 = vpop.f32.mrf.mxu0
    %v988 = vadd.f32 0.0, %v987
    %v989 = vpop.f32.mrf.mxu0
    %990 = vmatprep.mubr.f32.mxu0 0.0
    %991 = vmatmul.mubr.f32.gmra.mxu0 %v481
    %v992 = vpop.f32.mrf.mxu0
    %v993 = vadd.f32 0.0, %v992
    %v994 = vpop.f32.mrf.mxu0
    %995 = vmatprep.mubr.f32.mxu0 0.0
    %996 = vmatmul.mubr.f32.gmra.mxu0 %v484
    %v997 = vpop.f32.mrf.mxu0
    %v998 = vadd.f32 0.0, %v997
    %v999 = vpop.f32.mrf.mxu0
    %1000 = vmatprep.mubr.f32.mxu0 0.0
    %1001 = vmatmul.mubr.f32.gmra.mxu0 %v487
    %v1002 = vpop.f32.mrf.mxu0
    %v1003 = vadd.f32 0.0, %v1002
    %v1004 = vpop.f32.mrf.mxu0
    %1005 = vmatprep.mubr.f32.mxu0 0.0
    %1006 = vmatmul.mubr.f32.gmra.mxu0 %v490
    %v1007 = vpop.f32.mrf.mxu0
    %v1008 = vadd.f32 0.0, %v1007
    %v1009 = vpop.f32.mrf.mxu0
    %1010 = vmatprep.mubr.f32.mxu0 0.0
    %1011 = vmatmul.mubr.f32.gmra.mxu0 %v493
    %v1012 = vpop.f32.mrf.mxu0
    %v1013 = vadd.f32 0.0, %v1012
    %v1014 = vpop.f32.mrf.mxu0
    %1015 = vmatprep.mubr.f32.mxu0 0.0
    %1016 = vmatmul.mubr.f32.gmra.mxu0 %v496
    %v1017 = vpop.f32.mrf.mxu0
    %v1018 = vadd.f32 0.0, %v1017
    %v1019 = vpop.f32.mrf.mxu0
    %1020 = vmatprep.mubr.f32.mxu0 0.0
    %1021 = vmatmul.mubr.f32.gmra.mxu0 %v499
    %v1022 = vpop.f32.mrf.mxu0
    %v1023 = vadd.f32 0.0, %v1022
    %v1024 = vpop.f32.mrf.mxu0
    %1025 = vmatprep.mubr.f32.mxu0 0.0
    %1026 = vmatmul.mubr.f32.gmra.mxu0 %v502
    %v1027 = vpop.f32.mrf.mxu0
    %v1028 = vadd.f32 0.0, %v1027
    %v1029 = vpop.f32.mrf.mxu0
    %1030 = vmatprep.mubr.f32.mxu0 0.0
    %1031 = vmatmul.mubr.f32.gmra.mxu0 %v505
    %v1032 = vpop.f32.mrf.mxu0
    %v1033 = vadd.f32 0.0, %v1032
    %v1034 = vpop.f32.mrf.mxu0
    %1035 = vmatprep.mubr.f32.mxu0 0.0
    %1036 = vmatmul.mubr.f32.gmra.mxu0 %v508
    %v1037 = vpop.f32.mrf.mxu0
    %v1038 = vadd.f32 0.0, %v1037
    %v1039 = vpop.f32.mrf.mxu0
    %1040 = vdwg.mxu0
    %v1041 = vadd.f32 %v880, %v963
    %v1042 = vadd.f32 %v881, %v968
    %v1043 = vadd.f32 %v882, %v973
    %v1044 = vadd.f32 %v883, %v978
    %v1045 = vadd.f32 %v884, %v983
    %v1046 = vadd.f32 %v885, %v988
    %v1047 = vadd.f32 %v886, %v993
    %v1048 = vadd.f32 %v887, %v998
    %v1049 = vadd.f32 %v888, %v1003
    %v1050 = vadd.f32 %v889, %v1008
    %v1051 = vadd.f32 %v890, %v1013
    %v1052 = vadd.f32 %v891, %v1018
    %v1053 = vadd.f32 %v892, %v1023
    %v1054 = vadd.f32 %v893, %v1028
    %v1055 = vadd.f32 %v894, %v1033
    %v1056 = vadd.f32 %v895, %v1038
    %vm1057 = vcmask 7168
    %1058 = vst.msk [vmem:[%s9] sm:$0xff] %vm1057, %v1041
    %1059 = vst.msk [vmem:[%s9 + $0x8] sm:$0xff] %vm1057, %v1042
    %1060 = vst.msk [vmem:[%s9 + $0x10] sm:$0xff] %vm1057, %v1043
    %1061 = vst.msk [vmem:[%s9 + $0x18] sm:$0xff] %vm1057, %v1044
    %1062 = vst.msk [vmem:[%s9 + $0x20] sm:$0xff] %vm1057, %v1045
    %1063 = vst.msk [vmem:[%s9 + $0x28] sm:$0xff] %vm1057, %v1046
    %1064 = vst.msk [vmem:[%s9 + $0x30] sm:$0xff] %vm1057, %v1047
    %1065 = vst.msk [vmem:[%s9 + $0x38] sm:$0xff] %vm1057, %v1048
    %1066 = vst.msk [vmem:[%s9 + $0x40] sm:$0xff] %vm1057, %v1049
    %1067 = vst.msk [vmem:[%s9 + $0x48] sm:$0xff] %vm1057, %v1050
    %1068 = vst.msk [vmem:[%s9 + $0x50] sm:$0xff] %vm1057, %v1051
    %1069 = vst.msk [vmem:[%s9 + $0x58] sm:$0xff] %vm1057, %v1052
    %1070 = vst.msk [vmem:[%s9 + $0x60] sm:$0xff] %vm1057, %v1053
    %1071 = vst.msk [vmem:[%s9 + $0x68] sm:$0xff] %vm1057, %v1054
    %1072 = vst.msk [vmem:[%s9 + $0x70] sm:$0xff] %vm1057, %v1055
    %1073 = vst.msk [vmem:[%s9 + $0x78] sm:$0xff] %vm1057, %v1056
    // Predicated region
    $region46: #{tpu_custom_call.1} parent=1 // pred_check
      _
    $region47: #{tpu_custom_call.1} parent=1 // pred_check_branch
      %1075 = sbr.rel (0) target = $region49
    $region48: #{tpu_custom_call.1} parent=1 // pred_region
      %s1076 = sadd.s32 0, 0
      %s1077 = smul.u32 2, %s1076
      %s1079 = ssub.s32 128, 128
      %1080 = vsyncadd [#allocation4], %s1079
      %s1081 = smul.addr %s1077, 64
      %s1082 = scalar_lea.hbm %s6, %s1081
      %s1083 = sshll.u32 [#allocation10], 4
      %s1084 = int_to_ptr.vmem [resolvable:$true] %s1083
      %1089 = dma.vmem_to_hbm [thread:$0]  %s1084, 128, %s1082, [#allocation4], 64, 64, 4
    $region49: #{tpu_custom_call.1} parent=1 // pred_fallthru
      _
    // Predicated region
    $region50: #{tpu_custom_call.1} parent=1 // pred_check
      _
    $region51: #{tpu_custom_call.1} parent=1 // pred_check_branch
      %1091 = sbr.rel (0) target = $region53
    $region52: #{tpu_custom_call.1} parent=1 // pred_region
      _
    $region53: #{tpu_custom_call.1} parent=1 // pred_fallthru
      _
    // Predicated region
    $region54: #{tpu_custom_call.1} parent=1 // pred_check
      _
    $region55: #{tpu_custom_call.1} parent=1 // pred_check_branch
      %1093 = sbr.rel (0) target = $region57
    $region56: #{tpu_custom_call.1} parent=1 // pred_region
      _
    $region57: #{tpu_custom_call.1} parent=1 // pred_fallthru
      _
    // Predicated region
    $region58: #{tpu_custom_call.1} parent=1 // pred_check
      _
    $region59: #{tpu_custom_call.1} parent=1 // pred_check_branch
      %1095 = sbr.rel (0) target = $region61
    $region60: #{tpu_custom_call.1} parent=1 // pred_region
      _
    $region61: #{tpu_custom_call.1} parent=1 // pred_fallthru
      _
    // Predicated region
    $region62: #{tpu_custom_call.1} parent=1 // pred_check
      _
    $region63: #{tpu_custom_call.1} parent=1 // pred_check_branch
      %1097 = sbr.rel (0) target = $region65
    $region64: #{tpu_custom_call.1} parent=1 // pred_region
      %1098 = dma.done [#allocation4], 128
    $region65: #{tpu_custom_call.1} parent=1 // pred_fallthru
      _
    // Predicated region
    $region66: #{tpu_custom_call.1} parent=1 // pred_check
      _
    $region67: #{tpu_custom_call.1} parent=1 // pred_check_branch
      %1100 = sbr.rel (0) target = $region69
    $region68: #{tpu_custom_call.1} parent=1 // pred_region
      _
    $region69: #{tpu_custom_call.1} parent=1 // pred_fallthru
      _
    // Predicated region
    $region70: #{tpu_custom_call.1} parent=1 // pred_check
      _
    $region71: #{tpu_custom_call.1} parent=1 // pred_check_branch
      %1102 = sbr.rel (0) target = $region73
    $region72: #{tpu_custom_call.1} parent=1 // pred_region
      _
    $region73: #{tpu_custom_call.1} parent=1 // pred_fallthru
      _
    // Predicated region
    $region74: #{tpu_custom_call.1} parent=1 // pred_check
      _
    $region75: #{tpu_custom_call.1} parent=1 // pred_check_branch
      %1104 = sbr.rel (0) target = $region77
    $region76: #{tpu_custom_call.1} parent=1 // pred_region
      _
    $region77: #{tpu_custom_call.1} parent=1 // pred_fallthru
      _
    %1105 = vsyncpa [#allocation3], 1
    %1106 = vsyncpa [#allocation6], 1
    %1107 = vsyncpa [#allocation9], 1
    %1108 = vsyncpa [#allocation4], 1

</llo_original>
